<compile_context>
chip_gen: v5e
topology: v5e:2x2
jax: 0.10.0
libtpu: 0.0.40
codegen_flags: <defaults>
</compile_context>

<pallas_src>
import functools

import jax
import jax.numpy as jnp
from jax.experimental import pallas as pl
from jax.experimental.pallas import tpu as pltpu


def _round_up(x, m):
    return (x + m - 1) // m * m


# ----------------------------- Pallas kernel --------------------------------

def _msconv_kernel(p_ref, w1_ref, w2_ref, sh_ref, w3_ref, o_ref, acc_ref,
                   *, k1_tiles):
    coutp = w1_ref.shape[1]
    k = pl.program_id(1)

    @pl.when(k == 0)
    def _():
        acc_ref[...] = jnp.zeros_like(acc_ref)

    p = p_ref[...]

    # Branch ks=6 contracts over the whole (reordered) K axis.
    acc_ref[:, coutp:] = acc_ref[:, coutp:] + jnp.dot(
        p, w2_ref[...], preferred_element_type=jnp.float32)

    # Branch ks=4: its taps occupy only the leading K1p columns -> skip the
    # remaining K tiles entirely (no wasted MXU work, no extra weight DMA).
    @pl.when(k < k1_tiles)
    def _():
        acc_ref[:, :coutp] = acc_ref[:, :coutp] + jnp.dot(
            p, w1_ref[...], preferred_element_type=jnp.float32)

    @pl.when(k == pl.num_programs(1) - 1)
    def _():
        # BN shift + ReLU in f32 (v5e has no bf16 VPU), then one fused bf16
        # matmul for the 1x1 "concat" conv, bf16 writeback.
        y = jnp.maximum(acc_ref[...] + sh_ref[...], 0.0)
        out = jnp.dot(y.astype(jnp.bfloat16), w3_ref[...],
                      preferred_element_type=jnp.float32)
        o_ref[...] = out.astype(o_ref.dtype)


# --------------------------- tiling / VMEM policy ---------------------------

def _vmem_limits():
    """Generation-aware scoped-VMEM limit and tiling budget (bytes)."""
    try:
        cap = int(pltpu.get_tpu_info().vmem_capacity_bytes)
    except Exception:
        cap = 64 * 2 ** 20            # conservative (v7x-sized) fallback
    limit = min(cap - 8 * 2 ** 20, 100 * 2 ** 20)   # ~56 MiB v7x, ~100 MiB v5e/v6e
    budget = limit - 8 * 2 ** 20                    # headroom for Mosaic scratch
    return budget, limit


def _pick_tiles(m, k1, coutp, budget_bytes):
    """Pick (tm, tk).  K is grid-tiled, so tm can stay large for any Cin."""
    tk = min(512, _round_up(k1, 128))
    fixed = (2 * 2 * tk * coutp * 2          # W1 + W2 tiles, bf16, dbl-buffered
             + 2 * 2 * coutp * coutp * 2     # fused W3, bf16, dbl-buffered
             + 2 * 2 * coutp * 4)            # BN shifts, f32, dbl-buffered
    tm = 8
    for cand in (1024, 512, 256, 128, 64, 32, 16, 8):
        c = min(cand, _round_up(m, 8))
        per = (2 * c * tk * 2                # patch tile, bf16, dbl-buffered
               + 2 * c * coutp * 2           # out tile, bf16, dbl-buffered
               + c * 2 * coutp * 4)          # f32 accumulator scratch
        if per + fixed <= budget_bytes:
            tm = c
            break
    return tm, tk


def _msconv_pallas(p, w1m, w2m, sh, w3m, m_valid, *, tm, tk, k1_tiles,
                   vmem_limit):
    m_pad, k_pad = p.shape
    coutp = w1m.shape[1]
    kernel = functools.partial(_msconv_kernel, k1_tiles=k1_tiles)
    out = pl.pallas_call(
        kernel,
        out_shape=jax.ShapeDtypeStruct((m_pad, coutp), jnp.bfloat16),
        grid_spec=pltpu.PrefetchScalarGridSpec(
            num_scalar_prefetch=0,
            grid=(m_pad // tm, k_pad // tk),
            in_specs=[
                pl.BlockSpec((tm, tk), lambda i, k: (i, k)),          # patches
                pl.BlockSpec((tk, coutp),                              # W1 (ks=4)
                             lambda i, k: (jnp.minimum(k, k1_tiles - 1), 0)),
                pl.BlockSpec((tk, coutp), lambda i, k: (k, 0)),        # W2 (ks=6)
                pl.BlockSpec((1, 2 * coutp), lambda i, k: (0, 0)),     # BN shifts
                pl.BlockSpec((2 * coutp, coutp), lambda i, k: (0, 0)),  # fused W3
            ],
            out_specs=pl.BlockSpec((tm, coutp), lambda i, k: (i, 0)),
            scratch_shapes=[pltpu.VMEM((tm, 2 * coutp), jnp.float32)],
        ),
        compiler_params=pltpu.CompilerParams(
            dimension_semantics=("parallel", "arbitrary"),
            vmem_limit_bytes=int(vmem_limit)),
    )(p, w1m, w2m, sh, w3m)
    return out[:m_valid]


# ------------------------------- JAX glue ------------------------------------

def _fold_bn(gamma, beta, mean, var, eps=1e-5):
    scale = gamma / jnp.sqrt(var + eps)
    shift = beta - mean * scale
    return scale, shift


def multi_scale_conv(x, params, stride=2, kern_sizes=(4, 6)):
    """x: (N, Cin, D, H, W) f32 -> (N, Cout, D//2, H//2, W//2) f32 (NCDHW)."""
    N, Cin, D, H, W = x.shape
    w1, w2, w3 = params["w1"], params["w2"], params["w3"]
    Cout = w1.shape[0]
    ks_s, ks_b = kern_sizes
    pad = (ks_b - stride) // 2
    off = (ks_b - ks_s) // 2

    Do = (D + 2 * pad - ks_b) // stride + 1
    Ho = (H + 2 * pad - ks_b) // stride + 1
    Wo = (W + 2 * pad - ks_b) // stride + 1
    M = N * Do * Ho * Wo

    # --- K-axis ordering: ks=4-subset taps first, then the remaining taps ---
    subset = [(kd, kh, kw)
              for kd in range(off, off + ks_s)
              for kh in range(off, off + ks_s)
              for kw in range(off, off + ks_s)]
    subset_set = set(subset)
    rest = [(kd, kh, kw)
            for kd in range(ks_b) for kh in range(ks_b) for kw in range(ks_b)
            if (kd, kh, kw) not in subset_set]
    tap_order = subset + rest
    n_sub = len(subset)                    # 64
    n_all = len(tap_order)                 # 216
    K1 = n_sub * Cin
    K2 = (n_all - n_sub) * Cin

    Coutp = _round_up(Cout, 128)
    budget, vmem_limit = _vmem_limits()
    tm, tk = _pick_tiles(M, K1, Coutp, budget)
    K1p = _round_up(K1, tk)
    K2p = _round_up(K2, tk)
    Kp = K1p + K2p
    k1_tiles = K1p // tk
    m_pad = _round_up(M, tm)

    # --- fold BN scale into the conv weights; keep the per-channel shift ---
    s1, b1 = _fold_bn(params["g1"], params["be1"], params["m1"], params["v1"])
    s2, b2 = _fold_bn(params["g2"], params["be2"], params["m2"], params["v2"])
    w1f = w1 * s1[:, None, None, None, None]
    w2f = w2 * s2[:, None, None, None, None]

    def tap_rows(wf, taps, base):
        # (Cout, Cin, k, k, k) -> (len(taps)*Cin, Cout), row index = tap*Cin + c
        rows = [wf[:, :, kd - base, kh - base, kw - base].T
                for kd, kh, kw in taps]
        return jnp.concatenate(rows, axis=0)

    w1m = jnp.pad(tap_rows(w1f, subset, off),
                  ((0, K1p - K1), (0, Coutp - Cout))).astype(jnp.bfloat16)
    w2m = jnp.concatenate([
        jnp.pad(tap_rows(w2f, subset, 0), ((0, K1p - K1), (0, Coutp - Cout))),
        jnp.pad(tap_rows(w2f, rest, 0), ((0, K2p - K2), (0, Coutp - Cout))),
    ], axis=0).astype(jnp.bfloat16)

    sh = jnp.zeros((1, 2 * Coutp), jnp.float32)
    sh = sh.at[0, :Cout].set(b1).at[0, Coutp:Coutp + Cout].set(b2)

    # Fused 1x1 "concat" conv weight (bf16): rows [0:Cout] act on branch-1,
    # rows [Coutp:Coutp+Cout] on branch-2.
    w3mat = w3.reshape(Cout, 2 * Cout)
    w3m = jnp.zeros((2 * Coutp, Coutp), jnp.float32)
    w3m = (w3m.at[:Cout, :Cout].set(w3mat[:, :Cout].T)
               .at[Coutp:Coutp + Cout, :Cout].set(w3mat[:, Cout:].T)
           ).astype(jnp.bfloat16)

    # --- single shared bf16 im2col patch stream (both branches read it) ---
    # TODO(synk): replace with in-kernel halo-slab DMA gathering (pl.ANY input
    # + pltpu.make_async_copy) to remove the ~27x HBM read amplification and
    # the HBM materialization of this matrix.
    xb = x.astype(jnp.bfloat16)
    xp = jnp.pad(xb, ((0, 0), (0, 0), (pad, pad), (pad, pad), (pad, pad)))
    cols = [xp[:, :,
               kd:kd + stride * Do:stride,
               kh:kh + stride * Ho:stride,
               kw:kw + stride * Wo:stride] for kd, kh, kw in tap_order]
    pt = jnp.stack(cols, axis=-1)              # (N, C, Do, Ho, Wo, T)
    pt = pt.transpose(0, 2, 3, 4, 5, 1)        # (N, Do, Ho, Wo, T, C)
    pt = pt.reshape(M, n_all * Cin)            # column = tap*Cin + c
    p = jnp.concatenate([
        jnp.pad(pt[:, :K1], ((0, m_pad - M), (0, K1p - K1))),
        jnp.pad(pt[:, K1:], ((0, m_pad - M), (0, K2p - K2))),
    ], axis=1)

    out_flat = _msconv_pallas(p, w1m, w2m, sh, w3m, M, tm=tm, tk=tk,
                              k1_tiles=k1_tiles, vmem_limit=vmem_limit)
    out = out_flat[:, :Cout].reshape(N, Do, Ho, Wo, Cout)
    # NCDHW/f32 to match the PyTorch module; callers that can consume
    # channels-last bf16 should skip this transpose/cast (saves one HBM pass).
    return out.transpose(0, 4, 1, 2, 3).astype(jnp.float32)


# ----------------------------- reference (JAX) -------------------------------

def _ref_forward(x, params, stride=2, kern_sizes=(4, 6), eps=1e-5):
    def conv3d(inp, w, s, p):
        return jax.lax.conv_general_dilated(
            inp, w, (s, s, s), [(p, p)] * 3,
            dimension_numbers=("NCDHW", "OIDHW", "NCDHW"))

    def bn_relu(y, g, be, m, v):
        shp = (1, -1, 1, 1, 1)
        y = (y - m.reshape(shp)) / jnp.sqrt(v.reshape(shp) + eps)
        return jnp.maximum(y * g.reshape(shp) + be.reshape(shp), 0.0)

    pads = [(ks - stride) // 2 for ks in kern_sizes]
    y1 = bn_relu(conv3d(x, params["w1"], stride, pads[0]),
                 params["g1"], params["be1"], params["m1"], params["v1"])
    y2 = bn_relu(conv3d(x, params["w2"], stride, pads[1]),
                 params["g2"], params["be2"], params["m2"], params["v2"])
    cat = jnp.concatenate([y1, y2], axis=1)
    return conv3d(cat, params["w3"], 1, 0)


# --------------------------------- main ---------------------------------------

if __name__ == "__main__":
    key = jax.random.PRNGKey(0)
    ks_w1, ks_w2, ks_w3, ks_bn, ks_x = jax.random.split(key, 5)

    N, Cin, Cout = 2, 4, 8
    D = H = W = 8  # -> output spatial 4

    params = {
        "w1": 0.05 * jax.random.normal(ks_w1, (Cout, Cin, 4, 4, 4), jnp.float32),
        "w2": 0.05 * jax.random.normal(ks_w2, (Cout, Cin, 6, 6, 6), jnp.float32),
        "w3": 0.10 * jax.random.normal(ks_w3, (Cout, 2 * Cout, 1, 1, 1), jnp.float32),
    }
    b1, b2, b3, b4, b5, b6, b7, b8 = jax.random.split(ks_bn, 8)
    params.update({
        "g1": 1.0 + 0.1 * jax.random.normal(b1, (Cout,), jnp.float32),
        "be1": 0.1 * jax.random.normal(b2, (Cout,), jnp.float32),
        "m1": 0.1 * jax.random.normal(b3, (Cout,), jnp.float32),
        "v1": 1.0 + 0.1 * jax.random.uniform(b4, (Cout,), jnp.float32),
        "g2": 1.0 + 0.1 * jax.random.normal(b5, (Cout,), jnp.float32),
        "be2": 0.1 * jax.random.normal(b6, (Cout,), jnp.float32),
        "m2": 0.1 * jax.random.normal(b7, (Cout,), jnp.float32),
        "v2": 1.0 + 0.1 * jax.random.uniform(b8, (Cout,), jnp.float32),
    })

    x = jax.random.normal(ks_x, (N, Cin, D, H, W), jnp.float32)

    out = jax.block_until_ready(jax.jit(multi_scale_conv)(x, params))
    ref = jax.block_until_ready(_ref_forward(x, params))

    assert out.shape == (N, Cout, D // 2, H // 2, W // 2), out.shape
    # bf16 patch/weight streams, bf16 1x1 conv and bf16 writeback (f32 MXU
    # accumulation throughout) -> slightly looser tolerance than pure f32.
    assert jnp.allclose(out, ref, atol=3e-2, rtol=3e-2), \
        float(jnp.max(jnp.abs(out - ref)))
    print("KERNEL_OK")
</pallas_src>

<mosaic_0001>
module attributes {stable_mosaic.version = 11 : i64} {
  func.func @_msconv_kernel(%arg0: i32, %arg1: i32, %arg2: memref<128x256xbf16, #tpu.memory_space<vmem>>, %arg3: memref<256x128xbf16, #tpu.memory_space<vmem>>, %arg4: memref<256x128xbf16, #tpu.memory_space<vmem>>, %arg5: memref<1x256xf32, #tpu.memory_space<vmem>>, %arg6: memref<256x128xbf16, #tpu.memory_space<vmem>>, %arg7: memref<128x128xbf16, #tpu.memory_space<vmem>>, %arg8: memref<128x256xf32, #tpu.memory_space<vmem>>) attributes {dimension_semantics = [#tpu.dimension_semantics<parallel>, #tpu.dimension_semantics<arbitrary>], iteration_bounds = array<i64: 1, 4>, scalar_prefetch = 0 : i64, scratch_operands = 1 : i64, tpu.core_type = #tpu.core_type<tc>, window_params = [{transform_indices = @transform_0, window_bounds = array<i64: 128, 256>}, {transform_indices = @transform_1, window_bounds = array<i64: 256, 128>}, {transform_indices = @transform_2, window_bounds = array<i64: 256, 128>}, {pipeline_mode = #tpu.pipeline_mode<synchronous>, transform_indices = @transform_3, window_bounds = array<i64: 1, 256>}, {pipeline_mode = #tpu.pipeline_mode<synchronous>, transform_indices = @transform_4, window_bounds = array<i64: 256, 128>}, {transform_indices = @transform_5, window_bounds = array<i64: 128, 128>}]} {
    %c0_i32 = arith.constant 0 : i32
    %0 = arith.cmpi eq, %arg1, %c0_i32 : i32
    %1 = arith.extui %0 : i1 to i32
    %c0_i32_0 = arith.constant 0 : i32
    %2 = arith.cmpi ne, %1, %c0_i32_0 : i32
    scf.if %2 {
      %cst_9 = arith.constant 0.000000e+00 : f32
      %15 = vector.broadcast %cst_9 : f32 to vector<128x256xf32>
      %c0_10 = arith.constant 0 : index
      %c0_11 = arith.constant 0 : index
      %16 = vector.load %arg8[%c0_10, %c0_11] : memref<128x256xf32, #tpu.memory_space<vmem>>, vector<128x256xf32>
      tpu.vector_store %arg8[%c0_10, %c0_11], %15 {strides = array<i32>} : memref<128x256xf32, #tpu.memory_space<vmem>>, vector<128x256xf32>,
    } else {
    }
    %c0 = arith.constant 0 : index
    %c0_1 = arith.constant 0 : index
    %3 = vector.load %arg2[%c0, %c0_1] : memref<128x256xbf16, #tpu.memory_space<vmem>>, vector<128x256xbf16>
    %c0_2 = arith.constant 0 : index
    %c128 = arith.constant 128 : index
    %4 = vector.load %arg8[%c0_2, %c128] : memref<128x256xf32, #tpu.memory_space<vmem>>, vector<128x128xf32>
    %c0_3 = arith.constant 0 : index
    %c0_4 = arith.constant 0 : index
    %5 = vector.load %arg4[%c0_3, %c0_4] : memref<256x128xbf16, #tpu.memory_space<vmem>>, vector<256x128xbf16>
    %cst = arith.constant dense<0.000000e+00> : vector<128x128xf32>
    %6 = tpu.matmul %3, %5, %cst {dimension_numbers = #tpu.dot_dimension_numbers<[1], [0], [0], [1], [0, 0, 1, 1], [], []>} : vector<128x256xbf16>, vector<256x128xbf16>, vector<128x128xf32> -> vector<128x128xf32>
    %7 = arith.addf %4, %6 : vector<128x128xf32>
    %c0_5 = arith.constant 0 : index
    %c128_6 = arith.constant 128 : index
    %8 = vector.load %arg8[%c0_5, %c128_6] : memref<128x256xf32, #tpu.memory_space<vmem>>, vector<128x128xf32>
    tpu.vector_store %arg8[%c0_5, %c128_6], %7 {strides = array<i32>} : memref<128x256xf32, #tpu.memory_space<vmem>>, vector<128x128xf32>,
    %c1_i32 = arith.constant 1 : i32
    %9 = arith.cmpi slt, %arg1, %c1_i32 : i32
    %10 = arith.extui %9 : i1 to i32
    %c0_i32_7 = arith.constant 0 : i32
    %11 = arith.cmpi ne, %10, %c0_i32_7 : i32
    scf.if %11 {
      %c0_9 = arith.constant 0 : index
      %c0_10 = arith.constant 0 : index
      %15 = vector.load %arg8[%c0_9, %c0_10] : memref<128x256xf32, #tpu.memory_space<vmem>>, vector<128x128xf32>
      %c0_11 = arith.constant 0 : index
      %c0_12 = arith.constant 0 : index
      %16 = vector.load %arg3[%c0_11, %c0_12] : memref<256x128xbf16, #tpu.memory_space<vmem>>, vector<256x128xbf16>
      %cst_13 = arith.constant dense<0.000000e+00> : vector<128x128xf32>
      %17 = tpu.matmul %3, %16, %cst_13 {dimension_numbers = #tpu.dot_dimension_numbers<[1], [0], [0], [1], [0, 0, 1, 1], [], []>} : vector<128x256xbf16>, vector<256x128xbf16>, vector<128x128xf32> -> vector<128x128xf32>
      %18 = arith.addf %15, %17 : vector<128x128xf32>
      %c0_14 = arith.constant 0 : index
      %c0_15 = arith.constant 0 : index
      %19 = vector.load %arg8[%c0_14, %c0_15] : memref<128x256xf32, #tpu.memory_space<vmem>>, vector<128x128xf32>
      tpu.vector_store %arg8[%c0_14, %c0_15], %18 {strides = array<i32>} : memref<128x256xf32, #tpu.memory_space<vmem>>, vector<128x128xf32>,
    } else {
    }
    %c3_i32 = arith.constant 3 : i32
    %12 = arith.cmpi eq, %arg1, %c3_i32 : i32
    %13 = arith.extui %12 : i1 to i32
    %c0_i32_8 = arith.constant 0 : i32
    %14 = arith.cmpi ne, %13, %c0_i32_8 : i32
    scf.if %14 {
      %c0_9 = arith.constant 0 : index
      %c0_10 = arith.constant 0 : index
      %15 = vector.load %arg8[%c0_9, %c0_10] : memref<128x256xf32, #tpu.memory_space<vmem>>, vector<128x256xf32>
      %c0_11 = arith.constant 0 : index
      %c0_12 = arith.constant 0 : index
      %16 = vector.load %arg5[%c0_11, %c0_12] : memref<1x256xf32, #tpu.memory_space<vmem>>, vector<1x256xf32>
      %17 = vector.broadcast %16 : vector<1x256xf32> to vector<128x256xf32>
      %18 = arith.addf %15, %17 : vector<128x256xf32>
      %cst_13 = arith.constant 0.000000e+00 : f32
      %19 = vector.broadcast %cst_13 : f32 to vector<128x256xf32>
      %20 = arith.maximumf %18, %19 : vector<128x256xf32>
      %21 = arith.truncf %20 : vector<128x256xf32> to vector<128x256xbf16>
      %c0_14 = arith.constant 0 : index
      %c0_15 = arith.constant 0 : index
      %22 = vector.load %arg6[%c0_14, %c0_15] : memref<256x128xbf16, #tpu.memory_space<vmem>>, vector<256x128xbf16>
      %cst_16 = arith.constant dense<0.000000e+00> : vector<128x128xf32>
      %23 = tpu.matmul %21, %22, %cst_16 {dimension_numbers = #tpu.dot_dimension_numbers<[1], [0], [0], [1], [0, 0, 1, 1], [], []>} : vector<128x256xbf16>, vector<256x128xbf16>, vector<128x128xf32> -> vector<128x128xf32>
      %24 = arith.truncf %23 : vector<128x128xf32> to vector<128x128xbf16>
      %c0_17 = arith.constant 0 : index
      %c0_18 = arith.constant 0 : index
      %25 = vector.load %arg7[%c0_17, %c0_18] : memref<128x128xbf16, #tpu.memory_space<vmem>>, vector<128x128xbf16>
      tpu.vector_store %arg7[%c0_17, %c0_18], %24 {strides = array<i32>} : memref<128x128xbf16, #tpu.memory_space<vmem>>, vector<128x128xbf16>,
    } else {
    }
    return
  }
  func.func @transform_0(%arg0: i32, %arg1: i32) -> (i32, i32) {
    %c0_i32 = arith.constant 0 : i32
    return %arg0, %arg1 : i32, i32
  }
  func.func @transform_1(%arg0: i32, %arg1: i32) -> (i32, i32) {
    %c0_i32 = arith.constant 0 : i32
    %0 = arith.minsi %arg1, %c0_i32 : i32
    %c0_i32_0 = arith.constant 0 : i32
    %c0_i32_1 = arith.constant 0 : i32
    return %0, %c0_i32_0 : i32, i32
  }
  func.func @transform_2(%arg0: i32, %arg1: i32) -> (i32, i32) {
    %c0_i32 = arith.constant 0 : i32
    %c0_i32_0 = arith.constant 0 : i32
    return %arg1, %c0_i32 : i32, i32
  }
  func.func @transform_3(%arg0: i32, %arg1: i32) -> (i32, i32) {
    %c0_i32 = arith.constant 0 : i32
    %c0_i32_0 = arith.constant 0 : i32
    %c0_i32_1 = arith.constant 0 : i32
    return %c0_i32, %c0_i32_0 : i32, i32
  }
  func.func @transform_4(%arg0: i32, %arg1: i32) -> (i32, i32) {
    %c0_i32 = arith.constant 0 : i32
    %c0_i32_0 = arith.constant 0 : i32
    %c0_i32_1 = arith.constant 0 : i32
    return %c0_i32, %c0_i32_0 : i32, i32
  }
  func.func @transform_5(%arg0: i32, %arg1: i32) -> (i32, i32) {
    %c0_i32 = arith.constant 0 : i32
    %c0_i32_0 = arith.constant 0 : i32
    return %arg0, %c0_i32 : i32, i32
  }
}

</mosaic_0001>

<llo_original>
// kernel: multi_scale_conv.1
$region0: #{multi_scale_conv.1}
  #allocation0 [shape = 'u32[]', space=smem, size = 0x4, offset = 0x4, fixed_abs, tag = 'smem constant byte address 0x4 - core index']
  #allocation1 [shape = 'u32[72,128]{1,0:T(1,128)}', space=vmem, size = 0x9000, scoped, tag = 'internal scratch']
  #allocation2 [shape = 'f32[128,256]{1,0:T(8,128)}', space=vmem, size = 0x20000, scoped, tag = 'scratch operand']
  %s0 = inlined_call_operand.vmem [shape: bf16[128,1024], index: 0, kind: input, shape index: {}]
  %s1 = inlined_call_operand.vmem [shape: bf16[256,128], index: 1, kind: input, shape index: {}]
  %s2 = inlined_call_operand.vmem [shape: bf16[1024,128], index: 2, kind: input, shape index: {}]
  %s3 = inlined_call_operand.vmem [shape: f32[1,256], index: 3, kind: input, shape index: {}]
  %s4 = inlined_call_operand.vmem [shape: bf16[256,128], index: 4, kind: input, shape index: {}]
  %s5 = inlined_call_operand.vmem [shape: bf16[128,128], index: 5, kind: output, shape index: {}]
  %s6 = sld [smem:[#allocation0]]
  $region103: #{multi_scale_conv.1} parent=0
    _
  %s8 = ssub.s32 1, %s6
  %s9 = scalar_select 0, %s8, %s6
  $region1: #{multi_scale_conv.1} parent=0
    #allocation3 [shape = 'u8[131072]{0}', space=vmem, size = 0x20000, scoped, tag = 'input window, operand 0']
    loop: start=0, step=1, limit=6
    $region2: #{multi_scale_conv.1} parent=1 // loop_pre_header
      _
    $region3: #{multi_scale_conv.1} parent=1 // loop_header
      %s11 = sphi 0, %s15
      %p12 = scmp.ge.s32.totalorder %s11, 6
      %s18 = sphi 0, %s30
      %s19 = sphi 0, %s26
      %s20 = sphi 0, %s18
      %s21 = sphi 0, %s19
      %s22 = sphi 0, %s20
      %s23 = sphi 0, %s21
      %s35 = sphi 0, %s37
      %s38 = sphi 0, %s35
      %s39 = sphi 0, %s38
      %s55 = sphi 0, %s39
      %s65 = sphi 0, %s67
      %s68 = sphi 0, %s65
      %s69 = sphi 0, %s68
      %s85 = sphi 0, %s69
      %s91 = sphi 0, %s93
      %s94 = sphi 0, %s91
      %s95 = sphi 0, %s94
      %s111 = sphi 0, %s95
      %s115 = sphi 0, %s115
      %s117 = sphi 0, %s115
      %s118 = sphi 0, %s117
      %s132 = sphi 0, %s118
      %s136 = sphi 0, %s136
      %s138 = sphi 0, %s136
      %s139 = sphi 0, %s138
      %s153 = sphi 0, %s139
      %s159 = sphi 0, %s161
      %s162 = sphi 0, %s159
      %s163 = sphi 0, %s162
      %s179 = sphi 0, %s163
    $region4: #{multi_scale_conv.1} parent=1 // loop_header_branch
      %14 = sbr.rel (%p12) target = $region8
    $region5: #{multi_scale_conv.1} parent=1 // loop_body
      %s16 = ssub.s32 %s11, 1
      %s17 = ssub.s32 %s11, 2
      %s24 = sadd.s32 1, %s19
      %p25 = scmp.ge.s32.totalorder %s24, 4
      %s26 = scalar_select %p25, 0, %s24
      %s27 = sadd.s32 1, %s18
      %s28 = scalar_select %p25, %s27, %s18
      %p29 = scmp.ge.s32.totalorder %s28, 1
      %s30 = scalar_select %p29, 0, %s28
      %s31 = ssub.s32 %s18, %s30
      %s32 = ssub.s32 %s19, %s26
      %s33 = sor.u32 %s31, %s32
      %p34 = scmp.eq.s32.totalorder %s33, 0
      %s36 = sadd.s32 %s35, 1
      %s37 = scalar_select %p34, %s35, %s36
      %p40 = pneg %p34
      %p41 = scmp.eq.s32.totalorder %s11, 3
      %p42 = por %p40, %p41
      %p43 = scmp.ne.s32.totalorder %s35, %s38
      %p44 = scmp.eq.s32.totalorder %s11, 0
      %p45 = por %p43, %p44
      %p46 = scmp.ne.s32.totalorder %s35, %s38
      %p47 = scmp.eq.s32.totalorder %s16, 3
      %p48 = por %p46, %p47
      %p49 = scmp.ne.s32.totalorder %s38, %s39
      %p50 = scmp.eq.s32.totalorder %s16, 0
      %p51 = por %p49, %p50
      %p52 = scmp.ne.s32.totalorder %s38, %s39
      %p53 = scmp.eq.s32.totalorder %s17, 3
      %p54 = por %p52, %p53
      %p56 = scmp.ne.s32.totalorder %s39, %s55
      %p57 = scmp.eq.s32.totalorder %s17, 0
      %p58 = por %p56, %p57
      %p59 = scmp.lt.s32.totalorder %s19, 0
      %s60 = scalar_select %p59, %s19, 0
      %p61 = scmp.lt.s32.totalorder %s26, 0
      %s62 = scalar_select %p61, %s26, 0
      %s63 = ssub.s32 %s60, %s62
      %p64 = scmp.eq.s32.totalorder %s63, 0
      %s66 = sadd.s32 %s65, 1
      %s67 = scalar_select %p64, %s65, %s66
      %p70 = pneg %p64
      %p71 = scmp.eq.s32.totalorder %s11, 3
      %p72 = por %p70, %p71
      %p73 = scmp.ne.s32.totalorder %s65, %s68
      %p74 = scmp.eq.s32.totalorder %s11, 0
      %p75 = por %p73, %p74
      %p76 = scmp.ne.s32.totalorder %s65, %s68
      %p77 = scmp.eq.s32.totalorder %s16, 3
      %p78 = por %p76, %p77
      %p79 = scmp.ne.s32.totalorder %s68, %s69
      %p80 = scmp.eq.s32.totalorder %s16, 0
      %p81 = por %p79, %p80
      %p82 = scmp.ne.s32.totalorder %s68, %s69
      %p83 = scmp.eq.s32.totalorder %s17, 3
      %p84 = por %p82, %p83
      %p86 = scmp.ne.s32.totalorder %s69, %s85
      %p87 = scmp.eq.s32.totalorder %s17, 0
      %p88 = por %p86, %p87
      %s89 = ssub.s32 %s19, %s26
      %p90 = scmp.eq.s32.totalorder %s89, 0
      %s92 = sadd.s32 %s91, 1
      %s93 = scalar_select %p90, %s91, %s92
      %p96 = pneg %p90
      %p97 = scmp.eq.s32.totalorder %s11, 3
      %p98 = por %p96, %p97
      %p99 = scmp.ne.s32.totalorder %s91, %s94
      %p100 = scmp.eq.s32.totalorder %s11, 0
      %p101 = por %p99, %p100
      %p102 = scmp.ne.s32.totalorder %s91, %s94
      %p103 = scmp.eq.s32.totalorder %s16, 3
      %p104 = por %p102, %p103
      %p105 = scmp.ne.s32.totalorder %s94, %s95
      %p106 = scmp.eq.s32.totalorder %s16, 0
      %p107 = por %p105, %p106
      %p108 = scmp.ne.s32.totalorder %s94, %s95
      %p109 = scmp.eq.s32.totalorder %s17, 3
      %p110 = por %p108, %p109
      %p112 = scmp.ne.s32.totalorder %s95, %s111
      %p113 = scmp.eq.s32.totalorder %s17, 0
      %p114 = por %p112, %p113
      %s116 = sadd.s32 %s115, 1
      %p119 = scmp.eq.s32.totalorder %s11, 3
      %p120 = scmp.ne.s32.totalorder %s115, %s117
      %p121 = scmp.eq.s32.totalorder %s11, 0
      %p122 = por %p120, %p121
      %p123 = scmp.ne.s32.totalorder %s115, %s117
      %p124 = scmp.eq.s32.totalorder %s16, 3
      %p125 = por %p123, %p124
      %p126 = scmp.ne.s32.totalorder %s117, %s118
      %p127 = scmp.eq.s32.totalorder %s16, 0
      %p128 = por %p126, %p127
      %p129 = scmp.ne.s32.totalorder %s117, %s118
      %p130 = scmp.eq.s32.totalorder %s17, 3
      %p131 = por %p129, %p130
      %p133 = scmp.ne.s32.totalorder %s118, %s132
      %p134 = scmp.eq.s32.totalorder %s17, 0
      %p135 = por %p133, %p134
      %s137 = sadd.s32 %s136, 1
      %p140 = scmp.eq.s32.totalorder %s11, 3
      %p141 = scmp.ne.s32.totalorder %s136, %s138
      %p142 = scmp.eq.s32.totalorder %s11, 0
      %p143 = por %p141, %p142
      %p144 = scmp.ne.s32.totalorder %s136, %s138
      %p145 = scmp.eq.s32.totalorder %s16, 3
      %p146 = por %p144, %p145
      %p147 = scmp.ne.s32.totalorder %s138, %s139
      %p148 = scmp.eq.s32.totalorder %s16, 0
      %p149 = por %p147, %p148
      %p150 = scmp.ne.s32.totalorder %s138, %s139
      %p151 = scmp.eq.s32.totalorder %s17, 3
      %p152 = por %p150, %p151
      %p154 = scmp.ne.s32.totalorder %s139, %s153
      %p155 = scmp.eq.s32.totalorder %s17, 0
      %p156 = por %p154, %p155
      %s157 = ssub.s32 %s18, %s30
      %p158 = scmp.eq.s32.totalorder %s157, 0
      %s160 = sadd.s32 %s159, 1
      %s161 = scalar_select %p158, %s159, %s160
      %p164 = pneg %p158
      %p165 = scmp.eq.s32.totalorder %s11, 3
      %p166 = por %p164, %p165
      %p167 = scmp.ne.s32.totalorder %s159, %s162
      %p168 = scmp.eq.s32.totalorder %s11, 0
      %p169 = por %p167, %p168
      %p170 = scmp.ne.s32.totalorder %s159, %s162
      %p171 = scmp.eq.s32.totalorder %s16, 3
      %p172 = por %p170, %p171
      %p173 = scmp.ne.s32.totalorder %s162, %s163
      %p174 = scmp.eq.s32.totalorder %s16, 0
      %p175 = por %p173, %p174
      %p176 = scmp.ne.s32.totalorder %s162, %s163
      %p177 = scmp.eq.s32.totalorder %s17, 3
      %p178 = por %p176, %p177
      %p180 = scmp.ne.s32.totalorder %s163, %s179
      %p181 = scmp.eq.s32.totalorder %s17, 0
      %p182 = por %p180, %p181
      %p183 = scmp.le.s32.totalorder 1, %s11
      %p184 = scmp.lt.s32.totalorder %s11, 5
      %p185 = pnand %p183, %p184
      %p186 = pneg %p185
      // Predicated region
      $region9: #{multi_scale_conv.1} parent=5 // pred_check
        _
      $region10: #{multi_scale_conv.1} parent=5 // pred_check_branch
        %188 = sbr.rel (%p185) target = $region12
      $region11: #{multi_scale_conv.1} parent=5 // pred_region
        %s189 = ssub.s32 %s11, 1
        // Predicated region
        $region13: #{multi_scale_conv.1} parent=11 // pred_check
          %p190 = pneg %p128
        $region14: #{multi_scale_conv.1} parent=11 // pred_check_branch
          %192 = sbr.rel (%p190) target = $region16
        $region15: #{multi_scale_conv.1} parent=11 // pred_region
          _
        $region16: #{multi_scale_conv.1} parent=11 // pred_fallthru
          _
        // Predicated region
        $region17: #{multi_scale_conv.1} parent=11 // pred_check
          %p193 = pneg %p149
        $region18: #{multi_scale_conv.1} parent=11 // pred_check_branch
          %195 = sbr.rel (%p193) target = $region20
        $region19: #{multi_scale_conv.1} parent=11 // pred_region
          _
        $region20: #{multi_scale_conv.1} parent=11 // pred_fallthru
          _
      $region12: #{multi_scale_conv.1} parent=5 // pred_fallthru
        _
      %p196 = scmp.lt.s32.totalorder %s11, 4
      // Predicated region
      $region21: #{multi_scale_conv.1} parent=5 // pred_check
        %p197 = pneg %p196
      $region22: #{multi_scale_conv.1} parent=5 // pred_check_branch
        %199 = sbr.rel (%p197) target = $region24
      $region23: #{multi_scale_conv.1} parent=5 // pred_region
        // Predicated region
        $region25: #{multi_scale_conv.1} parent=23 // pred_check
          %p200 = pneg %p45
        $region26: #{multi_scale_conv.1} parent=23 // pred_check_branch
          %202 = sbr.rel (%p200) target = $region28
        $region27: #{multi_scale_conv.1} parent=23 // pred_region
          %s203 = sand.u32 %s35, 1
          %s204 = sand.u32 %s35, 1
          %s205 = smul.addr %s204, 128
          %s206 = scalar_lea.vmem [#allocation3], %s205
          %s207 = smul.u32 16, %s18
          %s208 = smul.u32 2, %s19
          %s209 = smul.addr %s207, 8
          %s210 = sadd.s32 %s208, %s209
          %s211 = smul.addr %s210, 4
          %s212 = scalar_lea.vmem %s0, %s211
          // Predicated region
          $region29: #{multi_scale_conv.1} parent=27 // pred_check
            _
          $region30: #{multi_scale_conv.1} parent=27 // pred_check_branch
            %214 = sbr.rel (0) target = $region32
          $region31: #{multi_scale_conv.1} parent=27 // pred_region
            // Predicated region
            $region33: #{multi_scale_conv.1} parent=31 // pred_check
              _
            $region34: #{multi_scale_conv.1} parent=31 // pred_check_branch
              %216 = sbr.rel (0) target = $region36
            $region35: #{multi_scale_conv.1} parent=31 // pred_region
              // Predicated region
              $region48: #{multi_scale_conv.1} parent=35 // pred_check
                _
              $region49: #{multi_scale_conv.1} parent=35 // pred_check_branch
                %262 = sbr.rel (0) target = $region51
              $region50: #{multi_scale_conv.1} parent=35 // pred_region
                loop: start=0, step=1, limit=1
                $region52: #{multi_scale_conv.1} parent=50 // loop_pre_header
                  _
                $region53: #{multi_scale_conv.1} parent=50 // loop_header
                  %s264 = sphi 0, %s268
                  %p265 = scmp.ge.s32.totalorder %s264, 1
                  %s269 = sphi %s212, %s212
                  %s270 = sphi %s206, %s206
                $region54: #{multi_scale_conv.1} parent=50 // loop_header_branch
                  %267 = sbr.rel (%p265) target = $region58
                $region55: #{multi_scale_conv.1} parent=50 // loop_body
                  %v271 = vld [vmem:[%s269] sm:$0xff]
                  %272 = vst [vmem:[%s270] sm:$0xff] %v271
                  %v273 = vld [vmem:[%s269 + $0x20] sm:$0xff]
                  %274 = vst [vmem:[%s270 + $0x8] sm:$0xff] %v273
                  %v275 = vld [vmem:[%s269 + $0x40] sm:$0xff]
                  %276 = vst [vmem:[%s270 + $0x10] sm:$0xff] %v275
                  %v277 = vld [vmem:[%s269 + $0x60] sm:$0xff]
                  %278 = vst [vmem:[%s270 + $0x18] sm:$0xff] %v277
                  %v279 = vld [vmem:[%s269 + $0x80] sm:$0xff]
                  %280 = vst [vmem:[%s270 + $0x20] sm:$0xff] %v279
                  %v281 = vld [vmem:[%s269 + $0xa0] sm:$0xff]
                  %282 = vst [vmem:[%s270 + $0x28] sm:$0xff] %v281
                  %v283 = vld [vmem:[%s269 + $0xc0] sm:$0xff]
                  %284 = vst [vmem:[%s270 + $0x30] sm:$0xff] %v283
                  %v285 = vld [vmem:[%s269 + $0xe0] sm:$0xff]
                  %286 = vst [vmem:[%s270 + $0x38] sm:$0xff] %v285
                  %v287 = vld [vmem:[%s269 + $0x100] sm:$0xff]
                  %288 = vst [vmem:[%s270 + $0x40] sm:$0xff] %v287
                  %v289 = vld [vmem:[%s269 + $0x120] sm:$0xff]
                  %290 = vst [vmem:[%s270 + $0x48] sm:$0xff] %v289
                  %v291 = vld [vmem:[%s269 + $0x140] sm:$0xff]
                  %292 = vst [vmem:[%s270 + $0x50] sm:$0xff] %v291
                  %v293 = vld [vmem:[%s269 + $0x160] sm:$0xff]
                  %294 = vst [vmem:[%s270 + $0x58] sm:$0xff] %v293
                  %v295 = vld [vmem:[%s269 + $0x180] sm:$0xff]
                  %296 = vst [vmem:[%s270 + $0x60] sm:$0xff] %v295
                  %v297 = vld [vmem:[%s269 + $0x1a0] sm:$0xff]
                  %298 = vst [vmem:[%s270 + $0x68] sm:$0xff] %v297
                  %v299 = vld [vmem:[%s269 + $0x1c0] sm:$0xff]
                  %300 = vst [vmem:[%s270 + $0x70] sm:$0xff] %v299
                  %v301 = vld [vmem:[%s269 + $0x1e0] sm:$0xff]
                  %302 = vst [vmem:[%s270 + $0x78] sm:$0xff] %v301
                $region56: #{multi_scale_conv.1} parent=50 // loop_footer
                  %s268 = sadd.s32 1, %s264
                $region57: #{multi_scale_conv.1} parent=50 // loop_footer_branch
                  %263 = sbr.rel target = $region53
                $region58: #{multi_scale_conv.1} parent=50 // loop_exit
                  _
              $region51: #{multi_scale_conv.1} parent=35 // pred_fallthru
                _
              // Predicated region
              $region59: #{multi_scale_conv.1} parent=35 // pred_check
                _
              $region60: #{multi_scale_conv.1} parent=35 // pred_check_branch
                %304 = sbr.rel target = $region62
              $region61: #{multi_scale_conv.1} parent=35 // pred_region
                _
              $region62: #{multi_scale_conv.1} parent=35 // pred_fallthru
                _
            $region36: #{multi_scale_conv.1} parent=31 // pred_fallthru
              _
            // Predicated region
            $region37: #{multi_scale_conv.1} parent=31 // pred_check
              _
            $region38: #{multi_scale_conv.1} parent=31 // pred_check_branch
              %218 = sbr.rel target = $region40
            $region39: #{multi_scale_conv.1} parent=31 // pred_region
              %s220 = ssub.s32 256, 1
              loop: start=0, step=1, limit=1
              $region41: #{multi_scale_conv.1} parent=39 // loop_pre_header
                _
              $region42: #{multi_scale_conv.1} parent=39 // loop_header
                %s222 = sphi 0, %s226
                %p223 = scmp.ge.s32.totalorder %s222, 1
                %s227 = sphi %s212, %s212
                %s228 = sphi %s206, %s206
              $region43: #{multi_scale_conv.1} parent=39 // loop_header_branch
                %225 = sbr.rel (%p223) target = $region47
              $region44: #{multi_scale_conv.1} parent=39 // loop_body
                %v229 = vld [vmem:[%s227] sm:%s220]
                %230 = vst [vmem:[%s228] sm:%s220] %v229
                %v231 = vld [vmem:[%s227 + $0x20] sm:%s220]
                %232 = vst [vmem:[%s228 + $0x8] sm:%s220] %v231
                %v233 = vld [vmem:[%s227 + $0x40] sm:%s220]
                %234 = vst [vmem:[%s228 + $0x10] sm:%s220] %v233
                %v235 = vld [vmem:[%s227 + $0x60] sm:%s220]
                %236 = vst [vmem:[%s228 + $0x18] sm:%s220] %v235
                %v237 = vld [vmem:[%s227 + $0x80] sm:%s220]
                %238 = vst [vmem:[%s228 + $0x20] sm:%s220] %v237
                %v239 = vld [vmem:[%s227 + $0xa0] sm:%s220]
                %240 = vst [vmem:[%s228 + $0x28] sm:%s220] %v239
                %v241 = vld [vmem:[%s227 + $0xc0] sm:%s220]
                %242 = vst [vmem:[%s228 + $0x30] sm:%s220] %v241
                %v243 = vld [vmem:[%s227 + $0xe0] sm:%s220]
                %244 = vst [vmem:[%s228 + $0x38] sm:%s220] %v243
                %v245 = vld [vmem:[%s227 + $0x100] sm:%s220]
                %246 = vst [vmem:[%s228 + $0x40] sm:%s220] %v245
                %v247 = vld [vmem:[%s227 + $0x120] sm:%s220]
                %248 = vst [vmem:[%s228 + $0x48] sm:%s220] %v247
                %v249 = vld [vmem:[%s227 + $0x140] sm:%s220]
                %250 = vst [vmem:[%s228 + $0x50] sm:%s220] %v249
                %v251 = vld [vmem:[%s227 + $0x160] sm:%s220]
                %252 = vst [vmem:[%s228 + $0x58] sm:%s220] %v251
                %v253 = vld [vmem:[%s227 + $0x180] sm:%s220]
                %254 = vst [vmem:[%s228 + $0x60] sm:%s220] %v253
                %v255 = vld [vmem:[%s227 + $0x1a0] sm:%s220]
                %256 = vst [vmem:[%s228 + $0x68] sm:%s220] %v255
                %v257 = vld [vmem:[%s227 + $0x1c0] sm:%s220]
                %258 = vst [vmem:[%s228 + $0x70] sm:%s220] %v257
                %v259 = vld [vmem:[%s227 + $0x1e0] sm:%s220]
                %260 = vst [vmem:[%s228 + $0x78] sm:%s220] %v259
              $region45: #{multi_scale_conv.1} parent=39 // loop_footer
                %s226 = sadd.s32 1, %s222
              $region46: #{multi_scale_conv.1} parent=39 // loop_footer_branch
                %221 = sbr.rel target = $region42
              $region47: #{multi_scale_conv.1} parent=39 // loop_exit
                _
            $region40: #{multi_scale_conv.1} parent=31 // pred_fallthru
              _
          $region32: #{multi_scale_conv.1} parent=27 // pred_fallthru
            _
          %305 = vnop
        $region28: #{multi_scale_conv.1} parent=23 // pred_fallthru
          _
        // Predicated region
        $region63: #{multi_scale_conv.1} parent=23 // pred_check
          %p306 = pneg %p75
        $region64: #{multi_scale_conv.1} parent=23 // pred_check_branch
          %308 = sbr.rel (%p306) target = $region66
        $region65: #{multi_scale_conv.1} parent=23 // pred_region
          %p309 = scmp.lt.s32.totalorder %s19, 0
          %s310 = scalar_select %p309, %s19, 0
          %s311 = smul.u32 32, %s310
          %p312 = scmp.lt.s32.totalorder %s311, 31
          %s313 = scalar_select %p312, %s311, 31
          %s314 = smul.addr %s313, 4
          %s315 = scalar_lea.vmem %s1, %s314
          %p316 = scmp.lt.s32.totalorder %s19, 0
          %s317 = scalar_select %p316, %s19, 0
          %s318 = smul.u32 32, %s317
        $region66: #{multi_scale_conv.1} parent=23 // pred_fallthru
          _
        // Predicated region
        $region67: #{multi_scale_conv.1} parent=23 // pred_check
          %p319 = pneg %p101
        $region68: #{multi_scale_conv.1} parent=23 // pred_check_branch
          %321 = sbr.rel (%p319) target = $region70
        $region69: #{multi_scale_conv.1} parent=23 // pred_region
          %s322 = smul.u32 32, %s19
          %p323 = scmp.lt.s32.totalorder %s322, 127
          %s324 = scalar_select %p323, %s322, 127
          %s325 = smul.addr %s324, 4
          %s326 = scalar_lea.vmem %s2, %s325
          %s327 = smul.u32 32, %s19
        $region70: #{multi_scale_conv.1} parent=23 // pred_fallthru
          _
      $region24: #{multi_scale_conv.1} parent=5 // pred_fallthru
        _
      %p328 = scmp.le.s32.totalorder 1, %s11
      %p329 = scmp.lt.s32.totalorder %s11, 5
      %p330 = pnand %p328, %p329
      %p331 = pneg %p330
      // Predicated region
      $region71: #{multi_scale_conv.1} parent=5 // pred_check
        _
      $region72: #{multi_scale_conv.1} parent=5 // pred_check_branch
        %333 = sbr.rel (%p330) target = $region74
      $region73: #{multi_scale_conv.1} parent=5 // pred_region
        %s334 = ssub.s32 %s11, 1
        %s335 = sand.u32 %s38, 1
        %s336 = sand.u32 %s38, 1
        %s337 = smul.addr %s336, 128
        %s338 = scalar_lea.vmem [#allocation3], %s337
        // Predicated region
        $region75: #{multi_scale_conv.1} parent=73 // pred_check
          %p339 = pneg %p51
        $region76: #{multi_scale_conv.1} parent=73 // pred_check_branch
          %341 = sbr.rel (%p339) target = $region78
        $region77: #{multi_scale_conv.1} parent=73 // pred_region
          _
        $region78: #{multi_scale_conv.1} parent=73 // pred_fallthru
          _
        %s342 = sand.u32 %s38, 1
        %s343 = sand.u32 %s38, 1
        %s344 = smul.addr %s343, 128
        %s345 = scalar_lea.vmem [#allocation3], %s344
        %p346 = pneg %p51
        %p347 = pneg %p48
        %p348 = scmp.lt.s32.totalorder %s21, 0
        %s349 = scalar_select %p348, %s21, 0
        %s350 = smul.u32 32, %s349
        %p351 = scmp.lt.s32.totalorder %s350, 31
        %s352 = scalar_select %p351, %s350, 31
        %s353 = smul.addr %s352, 4
        %s354 = scalar_lea.vmem %s1, %s353
        %p355 = pneg %p81
        %p356 = pneg %p78
        %s357 = smul.u32 32, %s21
        %p358 = scmp.lt.s32.totalorder %s357, 127
        %s359 = scalar_select %p358, %s357, 127
        %s360 = smul.addr %s359, 4
        %s361 = scalar_lea.vmem %s2, %s360
        %p362 = pneg %p107
        %p363 = pneg %p104
        %p364 = pneg %p128
        %p365 = pneg %p125
        %p366 = pneg %p149
        %p367 = pneg %p146
        %p368 = pneg %p175
        %p369 = pneg %p172
        %s370 = smul.u32 16, %s20
        %p371 = scmp.lt.s32.totalorder %s370, 15
        %s372 = scalar_select %p371, %s370, 15
        %s373 = smul.addr %s372, 4
        %s374 = scalar_lea.vmem %s5, %s373
        %s375 = smul.u32 16, %s20
        %s376 = smul.u32 2, %s21
        %p377 = scmp.lt.s32.totalorder %s21, 0
        %s378 = scalar_select %p377, %s21, 0
        %s379 = smul.u32 32, %s378
        %p380 = scmp.lt.s32.totalorder %s379, 31
        %s381 = scalar_select %p380, %s379, 31
        %s382 = smul.addr %s381, 4
        %s383 = scalar_lea.vmem %s1, %s382
        %p384 = scmp.lt.s32.totalorder %s21, 0
        %s385 = scalar_select %p384, %s21, 0
        %s386 = smul.u32 32, %s385
        %s387 = smul.u32 32, %s21
        %p388 = scmp.lt.s32.totalorder %s387, 127
        %s389 = scalar_select %p388, %s387, 127
        %s390 = smul.addr %s389, 4
        %s391 = scalar_lea.vmem %s2, %s390
        %s392 = smul.u32 32, %s21
        %s393 = smul.u32 16, %s20
        %p394 = scmp.lt.s32.totalorder %s393, 15
        %s395 = scalar_select %p394, %s393, 15
        %s396 = smul.addr %s395, 4
        %s397 = scalar_lea.vmem %s5, %s396
        %s398 = smul.u32 16, %s20
        %p399 = scmp.eq.s32.totalorder %s21, 0
        // Predicated region
        $region79: #{multi_scale_conv.1} parent=73 // pred_check
          %p400 = pneg %p399
        $region80: #{multi_scale_conv.1} parent=73 // pred_check_branch
          %402 = sbr.rel (%p400) target = $region82
        $region81: #{multi_scale_conv.1} parent=73 // pred_region
          %403 = vst [vmem:[#allocation2] sm:$0xff] 0.0
          %404 = vst [vmem:[#allocation2 + $0x8] sm:$0xff] 0.0
          %405 = vst [vmem:[#allocation2 + $0x10] sm:$0xff] 0.0
          %406 = vst [vmem:[#allocation2 + $0x18] sm:$0xff] 0.0
          %407 = vst [vmem:[#allocation2 + $0x20] sm:$0xff] 0.0
          %408 = vst [vmem:[#allocation2 + $0x28] sm:$0xff] 0.0
          %409 = vst [vmem:[#allocation2 + $0x30] sm:$0xff] 0.0
          %410 = vst [vmem:[#allocation2 + $0x38] sm:$0xff] 0.0
          %411 = vst [vmem:[#allocation2 + $0x40] sm:$0xff] 0.0
          %412 = vst [vmem:[#allocation2 + $0x48] sm:$0xff] 0.0
          %413 = vst [vmem:[#allocation2 + $0x50] sm:$0xff] 0.0
          %414 = vst [vmem:[#allocation2 + $0x58] sm:$0xff] 0.0
          %415 = vst [vmem:[#allocation2 + $0x60] sm:$0xff] 0.0
          %416 = vst [vmem:[#allocation2 + $0x68] sm:$0xff] 0.0
          %417 = vst [vmem:[#allocation2 + $0x70] sm:$0xff] 0.0
          %418 = vst [vmem:[#allocation2 + $0x78] sm:$0xff] 0.0
          %419 = vst [vmem:[#allocation2 + $0x80] sm:$0xff] 0.0
          %420 = vst [vmem:[#allocation2 + $0x88] sm:$0xff] 0.0
          %421 = vst [vmem:[#allocation2 + $0x90] sm:$0xff] 0.0
          %422 = vst [vmem:[#allocation2 + $0x98] sm:$0xff] 0.0
          %423 = vst [vmem:[#allocation2 + $0xa0] sm:$0xff] 0.0
          %424 = vst [vmem:[#allocation2 + $0xa8] sm:$0xff] 0.0
          %425 = vst [vmem:[#allocation2 + $0xb0] sm:$0xff] 0.0
          %426 = vst [vmem:[#allocation2 + $0xb8] sm:$0xff] 0.0
          %427 = vst [vmem:[#allocation2 + $0xc0] sm:$0xff] 0.0
          %428 = vst [vmem:[#allocation2 + $0xc8] sm:$0xff] 0.0
          %429 = vst [vmem:[#allocation2 + $0xd0] sm:$0xff] 0.0
          %430 = vst [vmem:[#allocation2 + $0xd8] sm:$0xff] 0.0
          %431 = vst [vmem:[#allocation2 + $0xe0] sm:$0xff] 0.0
          %432 = vst [vmem:[#allocation2 + $0xe8] sm:$0xff] 0.0
          %433 = vst [vmem:[#allocation2 + $0xf0] sm:$0xff] 0.0
          %434 = vst [vmem:[#allocation2 + $0xf8] sm:$0xff] 0.0
        $region82: #{multi_scale_conv.1} parent=73 // pred_fallthru
          _
        %v435 = vld [vmem:[%s338] sm:$0xff]
        %v436 = vld [vmem:[%s338 + $0x8] sm:$0xff]
        %v437 = vld [vmem:[%s338 + $0x10] sm:$0xff]
        %v438 = vld [vmem:[%s338 + $0x18] sm:$0xff]
        %v439 = vld [vmem:[%s338 + $0x20] sm:$0xff]
        %v440 = vld [vmem:[%s338 + $0x28] sm:$0xff]
        %v441 = vld [vmem:[%s338 + $0x30] sm:$0xff]
        %v442 = vld [vmem:[%s338 + $0x38] sm:$0xff]
        %v443 = vld [vmem:[%s338 + $0x40] sm:$0xff]
        %v444 = vld [vmem:[%s338 + $0x48] sm:$0xff]
        %v445 = vld [vmem:[%s338 + $0x50] sm:$0xff]
        %v446 = vld [vmem:[%s338 + $0x58] sm:$0xff]
        %v447 = vld [vmem:[%s338 + $0x60] sm:$0xff]
        %v448 = vld [vmem:[%s338 + $0x68] sm:$0xff]
        %v449 = vld [vmem:[%s338 + $0x70] sm:$0xff]
        %v450 = vld [vmem:[%s338 + $0x78] sm:$0xff]
        %v451 = vld [vmem:[#allocation2 + $0x8] sm:$0xff]
        %v452 = vld [vmem:[#allocation2 + $0x18] sm:$0xff]
        %v453 = vld [vmem:[#allocation2 + $0x28] sm:$0xff]
        %v454 = vld [vmem:[#allocation2 + $0x38] sm:$0xff]
        %v455 = vld [vmem:[#allocation2 + $0x48] sm:$0xff]
        %v456 = vld [vmem:[#allocation2 + $0x58] sm:$0xff]
        %v457 = vld [vmem:[#allocation2 + $0x68] sm:$0xff]
        %v458 = vld [vmem:[#allocation2 + $0x78] sm:$0xff]
        %v459 = vld [vmem:[#allocation2 + $0x88] sm:$0xff]
        %v460 = vld [vmem:[#allocation2 + $0x98] sm:$0xff]
        %v461 = vld [vmem:[#allocation2 + $0xa8] sm:$0xff]
        %v462 = vld [vmem:[#allocation2 + $0xb8] sm:$0xff]
        %v463 = vld [vmem:[#allocation2 + $0xc8] sm:$0xff]
        %v464 = vld [vmem:[#allocation2 + $0xd8] sm:$0xff]
        %v465 = vld [vmem:[#allocation2 + $0xe8] sm:$0xff]
        %v466 = vld [vmem:[#allocation2 + $0xf8] sm:$0xff]
        %v467 = vld [vmem:[%s391] sm:$0xf]
        %v468 = vld [vmem:[%s391 + $0x4] sm:$0xf]
        %v469 = vld [vmem:[%s391 + $0x8] sm:$0xf]
        %v470 = vld [vmem:[%s391 + $0xc] sm:$0xf]
        %v471 = vld [vmem:[%s391 + $0x10] sm:$0xf]
        %v472 = vld [vmem:[%s391 + $0x14] sm:$0xf]
        %v473 = vld [vmem:[%s391 + $0x18] sm:$0xf]
        %v474 = vld [vmem:[%s391 + $0x1c] sm:$0xf]
        %v475 = vld [vmem:[%s391 + $0x20] sm:$0xf]
        %v476 = vld [vmem:[%s391 + $0x24] sm:$0xf]
        %v477 = vld [vmem:[%s391 + $0x28] sm:$0xf]
        %v478 = vld [vmem:[%s391 + $0x2c] sm:$0xf]
        %v479 = vld [vmem:[%s391 + $0x30] sm:$0xf]
        %v480 = vld [vmem:[%s391 + $0x34] sm:$0xf]
        %v481 = vld [vmem:[%s391 + $0x38] sm:$0xf]
        %v482 = vld [vmem:[%s391 + $0x3c] sm:$0xf]
        %v483 = vld [vmem:[%s391 + $0x40] sm:$0xf]
        %v484 = vld [vmem:[%s391 + $0x44] sm:$0xf]
        %v485 = vld [vmem:[%s391 + $0x48] sm:$0xf]
        %v486 = vld [vmem:[%s391 + $0x4c] sm:$0xf]
        %v487 = vld [vmem:[%s391 + $0x50] sm:$0xf]
        %v488 = vld [vmem:[%s391 + $0x54] sm:$0xf]
        %v489 = vld [vmem:[%s391 + $0x58] sm:$0xf]
        %v490 = vld [vmem:[%s391 + $0x5c] sm:$0xf]
        %v491 = vld [vmem:[%s391 + $0x60] sm:$0xf]
        %v492 = vld [vmem:[%s391 + $0x64] sm:$0xf]
        %v493 = vld [vmem:[%s391 + $0x68] sm:$0xf]
        %v494 = vld [vmem:[%s391 + $0x6c] sm:$0xf]
        %v495 = vld [vmem:[%s391 + $0x70] sm:$0xf]
        %v496 = vld [vmem:[%s391 + $0x74] sm:$0xf]
        %v497 = vld [vmem:[%s391 + $0x78] sm:$0xf]
        %v498 = vld [vmem:[%s391 + $0x7c] sm:$0xf]
        %v515 = vunpack.c.l.b16 %v435
        %v516 = vunpack.c.h.b16 %v435
        %v517 = vunpack.c.l.b16 %v436
        %v518 = vunpack.c.h.b16 %v436
        %v519 = vunpack.c.l.b16 %v437
        %v520 = vunpack.c.h.b16 %v437
        %v521 = vunpack.c.l.b16 %v438
        %v522 = vunpack.c.h.b16 %v438
        %v523 = vunpack.c.l.b16 %v439
        %v524 = vunpack.c.h.b16 %v439
        %v525 = vunpack.c.l.b16 %v440
        %v526 = vunpack.c.h.b16 %v440
        %v527 = vunpack.c.l.b16 %v441
        %v528 = vunpack.c.h.b16 %v441
        %v529 = vunpack.c.l.b16 %v442
        %v530 = vunpack.c.h.b16 %v442
        %v531 = vunpack.c.l.b16 %v443
        %v532 = vunpack.c.h.b16 %v443
        %v533 = vunpack.c.l.b16 %v444
        %v534 = vunpack.c.h.b16 %v444
        %v535 = vunpack.c.l.b16 %v445
        %v536 = vunpack.c.h.b16 %v445
        %v537 = vunpack.c.l.b16 %v446
        %v538 = vunpack.c.h.b16 %v446
        %v539 = vunpack.c.l.b16 %v447
        %v540 = vunpack.c.h.b16 %v447
        %v541 = vunpack.c.l.b16 %v448
        %v542 = vunpack.c.h.b16 %v448
        %v543 = vunpack.c.l.b16 %v449
        %v544 = vunpack.c.h.b16 %v449
        %v545 = vunpack.c.l.b16 %v450
        %v546 = vunpack.c.h.b16 %v450
        %v547 = vpack.c.b16 %v517, %v515
        %v548 = vpack.c.b16 %v518, %v516
        %v549 = vpack.c.b16 %v521, %v519
        %v550 = vpack.c.b16 %v522, %v520
        %v551 = vpack.c.b16 %v525, %v523
        %v552 = vpack.c.b16 %v526, %v524
        %v553 = vpack.c.b16 %v529, %v527
        %v554 = vpack.c.b16 %v530, %v528
        %v555 = vpack.c.b16 %v533, %v531
        %v556 = vpack.c.b16 %v534, %v532
        %v557 = vpack.c.b16 %v537, %v535
        %v558 = vpack.c.b16 %v538, %v536
        %v559 = vpack.c.b16 %v541, %v539
        %v560 = vpack.c.b16 %v542, %v540
        %v561 = vpack.c.b16 %v545, %v543
        %v562 = vpack.c.b16 %v546, %v544
        %v611 = vunpack.c.l.b16 %v467
        %v612 = vunpack.c.l.b16 %v468
        %v613 = vunpack.c.l.b16 %v469
        %v614 = vunpack.c.l.b16 %v470
        %v615 = vunpack.c.l.b16 %v471
        %v616 = vunpack.c.l.b16 %v472
        %v617 = vunpack.c.l.b16 %v473
        %v618 = vunpack.c.l.b16 %v474
        %v619 = vunpack.c.l.b16 %v475
        %v620 = vunpack.c.l.b16 %v476
        %v621 = vunpack.c.l.b16 %v477
        %v622 = vunpack.c.l.b16 %v478
        %v623 = vunpack.c.l.b16 %v479
        %v624 = vunpack.c.l.b16 %v480
        %v625 = vunpack.c.l.b16 %v481
        %v626 = vunpack.c.l.b16 %v482
        %v627 = vunpack.c.l.b16 %v483
        %v628 = vunpack.c.l.b16 %v484
        %v629 = vunpack.c.l.b16 %v485
        %v630 = vunpack.c.l.b16 %v486
        %v631 = vunpack.c.l.b16 %v487
        %v632 = vunpack.c.l.b16 %v488
        %v633 = vunpack.c.l.b16 %v489
        %v634 = vunpack.c.l.b16 %v490
        %v635 = vunpack.c.l.b16 %v491
        %v636 = vunpack.c.l.b16 %v492
        %v637 = vunpack.c.l.b16 %v493
        %v638 = vunpack.c.l.b16 %v494
        %v639 = vunpack.c.l.b16 %v495
        %v640 = vunpack.c.l.b16 %v496
        %v641 = vunpack.c.l.b16 %v497
        %v642 = vunpack.c.l.b16 %v498
        %v643 = vpack.c.b16 %v612, %v611
        %v644 = vpack.c.b16 %v614, %v613
        %v645 = vpack.c.b16 %v616, %v615
        %v646 = vpack.c.b16 %v618, %v617
        %v647 = vpack.c.b16 %v620, %v619
        %v648 = vpack.c.b16 %v622, %v621
        %v649 = vpack.c.b16 %v624, %v623
        %v650 = vpack.c.b16 %v626, %v625
        %v651 = vpack.c.b16 %v628, %v627
        %v652 = vpack.c.b16 %v630, %v629
        %v653 = vpack.c.b16 %v632, %v631
        %v654 = vpack.c.b16 %v634, %v633
        %v655 = vpack.c.b16 %v636, %v635
        %v656 = vpack.c.b16 %v638, %v637
        %v657 = vpack.c.b16 %v640, %v639
        %v658 = vpack.c.b16 %v642, %v641
        %675 = vmatpush.bf16.msra.mxu0 %v650
        %676 = vmatpush.bf16.msra.mxu0 %v649
        %677 = vmatpush.bf16.msra.mxu0 %v648
        %678 = vmatpush.bf16.msra.mxu0 %v647
        %679 = vmatpush.bf16.msra.mxu0 %v646
        %680 = vmatpush.bf16.msra.mxu0 %v645
        %681 = vmatpush.bf16.msra.mxu0 %v644
        %682 = vmatpush.bf16.msra.mxu0 %v643
        %683 = vmatmul.bf16.gmra.mxu0 %v547
        %v684 = vpop.f32.mrf.mxu0
        %v685 = vadd.f32 0.0, %v684
        %v686 = vpop.f32.mrf.mxu0
        %v687 = vadd.f32 0.0, %v686
        %688 = vmatmul.bf16.gmra.mxu0 %v549
        %v689 = vpop.f32.mrf.mxu0
        %v690 = vadd.f32 0.0, %v689
        %v691 = vpop.f32.mrf.mxu0
        %v692 = vadd.f32 0.0, %v691
        %693 = vmatmul.bf16.gmra.mxu0 %v551
        %v694 = vpop.f32.mrf.mxu0
        %v695 = vadd.f32 0.0, %v694
        %v696 = vpop.f32.mrf.mxu0
        %v697 = vadd.f32 0.0, %v696
        %698 = vmatmul.bf16.gmra.mxu0 %v553
        %v699 = vpop.f32.mrf.mxu0
        %v700 = vadd.f32 0.0, %v699
        %v701 = vpop.f32.mrf.mxu0
        %v702 = vadd.f32 0.0, %v701
        %703 = vmatmul.bf16.gmra.mxu0 %v555
        %v704 = vpop.f32.mrf.mxu0
        %v705 = vadd.f32 0.0, %v704
        %v706 = vpop.f32.mrf.mxu0
        %v707 = vadd.f32 0.0, %v706
        %708 = vmatmul.bf16.gmra.mxu0 %v557
        %v709 = vpop.f32.mrf.mxu0
        %v710 = vadd.f32 0.0, %v709
        %v711 = vpop.f32.mrf.mxu0
        %v712 = vadd.f32 0.0, %v711
        %713 = vmatmul.bf16.gmra.mxu0 %v559
        %v714 = vpop.f32.mrf.mxu0
        %v715 = vadd.f32 0.0, %v714
        %v716 = vpop.f32.mrf.mxu0
        %v717 = vadd.f32 0.0, %v716
        %718 = vmatmul.bf16.gmra.mxu0 %v561
        %v719 = vpop.f32.mrf.mxu0
        %v720 = vadd.f32 0.0, %v719
        %v721 = vpop.f32.mrf.mxu0
        %v722 = vadd.f32 0.0, %v721
        %723 = vdwg.mxu0
        %724 = vmatpush.bf16.msra.mxu0 %v658
        %725 = vmatpush.bf16.msra.mxu0 %v657
        %726 = vmatpush.bf16.msra.mxu0 %v656
        %727 = vmatpush.bf16.msra.mxu0 %v655
        %728 = vmatpush.bf16.msra.mxu0 %v654
        %729 = vmatpush.bf16.msra.mxu0 %v653
        %730 = vmatpush.bf16.msra.mxu0 %v652
        %731 = vmatpush.bf16.msra.mxu0 %v651
        %732 = vmatmul.bf16.gmra.mxu0 %v548
        %v733 = vpop.f32.mrf.mxu0
        %v734 = vadd.f32 %v685, %v733
        %v735 = vpop.f32.mrf.mxu0
        %v736 = vadd.f32 %v687, %v735
        %737 = vmatmul.bf16.gmra.mxu0 %v550
        %v738 = vpop.f32.mrf.mxu0
        %v739 = vadd.f32 %v690, %v738
        %v740 = vpop.f32.mrf.mxu0
        %v741 = vadd.f32 %v692, %v740
        %742 = vmatmul.bf16.gmra.mxu0 %v552
        %v743 = vpop.f32.mrf.mxu0
        %v744 = vadd.f32 %v695, %v743
        %v745 = vpop.f32.mrf.mxu0
        %v746 = vadd.f32 %v697, %v745
        %747 = vmatmul.bf16.gmra.mxu0 %v554
        %v748 = vpop.f32.mrf.mxu0
        %v749 = vadd.f32 %v700, %v748
        %v750 = vpop.f32.mrf.mxu0
        %v751 = vadd.f32 %v702, %v750
        %752 = vmatmul.bf16.gmra.mxu0 %v556
        %v753 = vpop.f32.mrf.mxu0
        %v754 = vadd.f32 %v705, %v753
        %v755 = vpop.f32.mrf.mxu0
        %v756 = vadd.f32 %v707, %v755
        %757 = vmatmul.bf16.gmra.mxu0 %v558
        %v758 = vpop.f32.mrf.mxu0
        %v759 = vadd.f32 %v710, %v758
        %v760 = vpop.f32.mrf.mxu0
        %v761 = vadd.f32 %v712, %v760
        %762 = vmatmul.bf16.gmra.mxu0 %v560
        %v763 = vpop.f32.mrf.mxu0
        %v764 = vadd.f32 %v715, %v763
        %v765 = vpop.f32.mrf.mxu0
        %v766 = vadd.f32 %v717, %v765
        %767 = vmatmul.bf16.gmra.mxu0 %v562
        %v768 = vpop.f32.mrf.mxu0
        %v769 = vadd.f32 %v720, %v768
        %v770 = vpop.f32.mrf.mxu0
        %v771 = vadd.f32 %v722, %v770
        %772 = vdwg.mxu0
        %v773 = vadd.f32 %v451, %v734
        %v774 = vadd.f32 %v452, %v736
        %v775 = vadd.f32 %v453, %v739
        %v776 = vadd.f32 %v454, %v741
        %v777 = vadd.f32 %v455, %v744
        %v778 = vadd.f32 %v456, %v746
        %v779 = vadd.f32 %v457, %v749
        %v780 = vadd.f32 %v458, %v751
        %v781 = vadd.f32 %v459, %v754
        %v782 = vadd.f32 %v460, %v756
        %v783 = vadd.f32 %v461, %v759
        %v784 = vadd.f32 %v462, %v761
        %v785 = vadd.f32 %v463, %v764
        %v786 = vadd.f32 %v464, %v766
        %v787 = vadd.f32 %v465, %v769
        %v788 = vadd.f32 %v466, %v771
        %789 = vst [vmem:[#allocation2 + $0x8] sm:$0xff] %v773
        %790 = vst [vmem:[#allocation2 + $0x18] sm:$0xff] %v774
        %791 = vst [vmem:[#allocation2 + $0x28] sm:$0xff] %v775
        %792 = vst [vmem:[#allocation2 + $0x38] sm:$0xff] %v776
        %793 = vst [vmem:[#allocation2 + $0x48] sm:$0xff] %v777
        %794 = vst [vmem:[#allocation2 + $0x58] sm:$0xff] %v778
        %795 = vst [vmem:[#allocation2 + $0x68] sm:$0xff] %v779
        %796 = vst [vmem:[#allocation2 + $0x78] sm:$0xff] %v780
        %797 = vst [vmem:[#allocation2 + $0x88] sm:$0xff] %v781
        %798 = vst [vmem:[#allocation2 + $0x98] sm:$0xff] %v782
        %799 = vst [vmem:[#allocation2 + $0xa8] sm:$0xff] %v783
        %800 = vst [vmem:[#allocation2 + $0xb8] sm:$0xff] %v784
        %801 = vst [vmem:[#allocation2 + $0xc8] sm:$0xff] %v785
        %802 = vst [vmem:[#allocation2 + $0xd8] sm:$0xff] %v786
        %803 = vst [vmem:[#allocation2 + $0xe8] sm:$0xff] %v787
        %804 = vst [vmem:[#allocation2 + $0xf8] sm:$0xff] %v788
        %p805 = scmp.lt.s32.totalorder %s21, 1
        // Predicated region
        $region83: #{multi_scale_conv.1} parent=73 // pred_check
          %p806 = pneg %p805
        $region84: #{multi_scale_conv.1} parent=73 // pred_check_branch
          %808 = sbr.rel (%p806) target = $region86
        $region85: #{multi_scale_conv.1} parent=73 // pred_region
          %v809 = vld [vmem:[#allocation2] sm:$0xff]
          %v810 = vld [vmem:[#allocation2 + $0x10] sm:$0xff]
          %v811 = vld [vmem:[#allocation2 + $0x20] sm:$0xff]
          %v812 = vld [vmem:[#allocation2 + $0x30] sm:$0xff]
          %v813 = vld [vmem:[#allocation2 + $0x40] sm:$0xff]
          %v814 = vld [vmem:[#allocation2 + $0x50] sm:$0xff]
          %v815 = vld [vmem:[#allocation2 + $0x60] sm:$0xff]
          %v816 = vld [vmem:[#allocation2 + $0x70] sm:$0xff]
          %v817 = vld [vmem:[#allocation2 + $0x80] sm:$0xff]
          %v818 = vld [vmem:[#allocation2 + $0x90] sm:$0xff]
          %v819 = vld [vmem:[#allocation2 + $0xa0] sm:$0xff]
          %v820 = vld [vmem:[#allocation2 + $0xb0] sm:$0xff]
          %v821 = vld [vmem:[#allocation2 + $0xc0] sm:$0xff]
          %v822 = vld [vmem:[#allocation2 + $0xd0] sm:$0xff]
          %v823 = vld [vmem:[#allocation2 + $0xe0] sm:$0xff]
          %v824 = vld [vmem:[#allocation2 + $0xf0] sm:$0xff]
          %v825 = vld [vmem:[%s383] sm:$0xf]
          %v826 = vld [vmem:[%s383 + $0x4] sm:$0xf]
          %v827 = vld [vmem:[%s383 + $0x8] sm:$0xf]
          %v828 = vld [vmem:[%s383 + $0xc] sm:$0xf]
          %v829 = vld [vmem:[%s383 + $0x10] sm:$0xf]
          %v830 = vld [vmem:[%s383 + $0x14] sm:$0xf]
          %v831 = vld [vmem:[%s383 + $0x18] sm:$0xf]
          %v832 = vld [vmem:[%s383 + $0x1c] sm:$0xf]
          %v833 = vld [vmem:[%s383 + $0x20] sm:$0xf]
          %v834 = vld [vmem:[%s383 + $0x24] sm:$0xf]
          %v835 = vld [vmem:[%s383 + $0x28] sm:$0xf]
          %v836 = vld [vmem:[%s383 + $0x2c] sm:$0xf]
          %v837 = vld [vmem:[%s383 + $0x30] sm:$0xf]
          %v838 = vld [vmem:[%s383 + $0x34] sm:$0xf]
          %v839 = vld [vmem:[%s383 + $0x38] sm:$0xf]
          %v840 = vld [vmem:[%s383 + $0x3c] sm:$0xf]
          %v841 = vld [vmem:[%s383 + $0x40] sm:$0xf]
          %v842 = vld [vmem:[%s383 + $0x44] sm:$0xf]
          %v843 = vld [vmem:[%s383 + $0x48] sm:$0xf]
          %v844 = vld [vmem:[%s383 + $0x4c] sm:$0xf]
          %v845 = vld [vmem:[%s383 + $0x50] sm:$0xf]
          %v846 = vld [vmem:[%s383 + $0x54] sm:$0xf]
          %v847 = vld [vmem:[%s383 + $0x58] sm:$0xf]
          %v848 = vld [vmem:[%s383 + $0x5c] sm:$0xf]
          %v849 = vld [vmem:[%s383 + $0x60] sm:$0xf]
          %v850 = vld [vmem:[%s383 + $0x64] sm:$0xf]
          %v851 = vld [vmem:[%s383 + $0x68] sm:$0xf]
          %v852 = vld [vmem:[%s383 + $0x6c] sm:$0xf]
          %v853 = vld [vmem:[%s383 + $0x70] sm:$0xf]
          %v854 = vld [vmem:[%s383 + $0x74] sm:$0xf]
          %v855 = vld [vmem:[%s383 + $0x78] sm:$0xf]
          %v856 = vld [vmem:[%s383 + $0x7c] sm:$0xf]
          %v889 = vunpack.c.l.b16 %v825
          %v890 = vunpack.c.l.b16 %v826
          %v891 = vunpack.c.l.b16 %v827
          %v892 = vunpack.c.l.b16 %v828
          %v893 = vunpack.c.l.b16 %v829
          %v894 = vunpack.c.l.b16 %v830
          %v895 = vunpack.c.l.b16 %v831
          %v896 = vunpack.c.l.b16 %v832
          %v897 = vunpack.c.l.b16 %v833
          %v898 = vunpack.c.l.b16 %v834
          %v899 = vunpack.c.l.b16 %v835
          %v900 = vunpack.c.l.b16 %v836
          %v901 = vunpack.c.l.b16 %v837
          %v902 = vunpack.c.l.b16 %v838
          %v903 = vunpack.c.l.b16 %v839
          %v904 = vunpack.c.l.b16 %v840
          %v905 = vunpack.c.l.b16 %v841
          %v906 = vunpack.c.l.b16 %v842
          %v907 = vunpack.c.l.b16 %v843
          %v908 = vunpack.c.l.b16 %v844
          %v909 = vunpack.c.l.b16 %v845
          %v910 = vunpack.c.l.b16 %v846
          %v911 = vunpack.c.l.b16 %v847
          %v912 = vunpack.c.l.b16 %v848
          %v913 = vunpack.c.l.b16 %v849
          %v914 = vunpack.c.l.b16 %v850
          %v915 = vunpack.c.l.b16 %v851
          %v916 = vunpack.c.l.b16 %v852
          %v917 = vunpack.c.l.b16 %v853
          %v918 = vunpack.c.l.b16 %v854
          %v919 = vunpack.c.l.b16 %v855
          %v920 = vunpack.c.l.b16 %v856
          %v921 = vpack.c.b16 %v890, %v889
          %v922 = vpack.c.b16 %v892, %v891
          %v923 = vpack.c.b16 %v894, %v893
          %v924 = vpack.c.b16 %v896, %v895
          %v925 = vpack.c.b16 %v898, %v897
          %v926 = vpack.c.b16 %v900, %v899
          %v927 = vpack.c.b16 %v902, %v901
          %v928 = vpack.c.b16 %v904, %v903
          %v929 = vpack.c.b16 %v906, %v905
          %v930 = vpack.c.b16 %v908, %v907
          %v931 = vpack.c.b16 %v910, %v909
          %v932 = vpack.c.b16 %v912, %v911
          %v933 = vpack.c.b16 %v914, %v913
          %v934 = vpack.c.b16 %v916, %v915
          %v935 = vpack.c.b16 %v918, %v917
          %v936 = vpack.c.b16 %v920, %v919
          %953 = vmatpush.bf16.msra.mxu0 %v928
          %954 = vmatpush.bf16.msra.mxu0 %v927
          %955 = vmatpush.bf16.msra.mxu0 %v926
          %956 = vmatpush.bf16.msra.mxu0 %v925
          %957 = vmatpush.bf16.msra.mxu0 %v924
          %958 = vmatpush.bf16.msra.mxu0 %v923
          %959 = vmatpush.bf16.msra.mxu0 %v922
          %960 = vmatpush.bf16.msra.mxu0 %v921
          %961 = vmatmul.bf16.gmra.mxu0 %v547
          %v962 = vpop.f32.mrf.mxu0
          %v963 = vadd.f32 0.0, %v962
          %v964 = vpop.f32.mrf.mxu0
          %v965 = vadd.f32 0.0, %v964
          %966 = vmatmul.bf16.gmra.mxu0 %v549
          %v967 = vpop.f32.mrf.mxu0
          %v968 = vadd.f32 0.0, %v967
          %v969 = vpop.f32.mrf.mxu0
          %v970 = vadd.f32 0.0, %v969
          %971 = vmatmul.bf16.gmra.mxu0 %v551
          %v972 = vpop.f32.mrf.mxu0
          %v973 = vadd.f32 0.0, %v972
          %v974 = vpop.f32.mrf.mxu0
          %v975 = vadd.f32 0.0, %v974
          %976 = vmatmul.bf16.gmra.mxu0 %v553
          %v977 = vpop.f32.mrf.mxu0
          %v978 = vadd.f32 0.0, %v977
          %v979 = vpop.f32.mrf.mxu0
          %v980 = vadd.f32 0.0, %v979
          %981 = vmatmul.bf16.gmra.mxu0 %v555
          %v982 = vpop.f32.mrf.mxu0
          %v983 = vadd.f32 0.0, %v982
          %v984 = vpop.f32.mrf.mxu0
          %v985 = vadd.f32 0.0, %v984
          %986 = vmatmul.bf16.gmra.mxu0 %v557
          %v987 = vpop.f32.mrf.mxu0
          %v988 = vadd.f32 0.0, %v987
          %v989 = vpop.f32.mrf.mxu0
          %v990 = vadd.f32 0.0, %v989
          %991 = vmatmul.bf16.gmra.mxu0 %v559
          %v992 = vpop.f32.mrf.mxu0
          %v993 = vadd.f32 0.0, %v992
          %v994 = vpop.f32.mrf.mxu0
          %v995 = vadd.f32 0.0, %v994
          %996 = vmatmul.bf16.gmra.mxu0 %v561
          %v997 = vpop.f32.mrf.mxu0
          %v998 = vadd.f32 0.0, %v997
          %v999 = vpop.f32.mrf.mxu0
          %v1000 = vadd.f32 0.0, %v999
          %1001 = vdwg.mxu0
          %1002 = vmatpush.bf16.msra.mxu0 %v936
          %1003 = vmatpush.bf16.msra.mxu0 %v935
          %1004 = vmatpush.bf16.msra.mxu0 %v934
          %1005 = vmatpush.bf16.msra.mxu0 %v933
          %1006 = vmatpush.bf16.msra.mxu0 %v932
          %1007 = vmatpush.bf16.msra.mxu0 %v931
          %1008 = vmatpush.bf16.msra.mxu0 %v930
          %1009 = vmatpush.bf16.msra.mxu0 %v929
          %1010 = vmatmul.bf16.gmra.mxu0 %v548
          %v1011 = vpop.f32.mrf.mxu0
          %v1012 = vadd.f32 %v963, %v1011
          %v1013 = vpop.f32.mrf.mxu0
          %v1014 = vadd.f32 %v965, %v1013
          %1015 = vmatmul.bf16.gmra.mxu0 %v550
          %v1016 = vpop.f32.mrf.mxu0
          %v1017 = vadd.f32 %v968, %v1016
          %v1018 = vpop.f32.mrf.mxu0
          %v1019 = vadd.f32 %v970, %v1018
          %1020 = vmatmul.bf16.gmra.mxu0 %v552
          %v1021 = vpop.f32.mrf.mxu0
          %v1022 = vadd.f32 %v973, %v1021
          %v1023 = vpop.f32.mrf.mxu0
          %v1024 = vadd.f32 %v975, %v1023
          %1025 = vmatmul.bf16.gmra.mxu0 %v554
          %v1026 = vpop.f32.mrf.mxu0
          %v1027 = vadd.f32 %v978, %v1026
          %v1028 = vpop.f32.mrf.mxu0
          %v1029 = vadd.f32 %v980, %v1028
          %1030 = vmatmul.bf16.gmra.mxu0 %v556
          %v1031 = vpop.f32.mrf.mxu0
          %v1032 = vadd.f32 %v983, %v1031
          %v1033 = vpop.f32.mrf.mxu0
          %v1034 = vadd.f32 %v985, %v1033
          %1035 = vmatmul.bf16.gmra.mxu0 %v558
          %v1036 = vpop.f32.mrf.mxu0
          %v1037 = vadd.f32 %v988, %v1036
          %v1038 = vpop.f32.mrf.mxu0
          %v1039 = vadd.f32 %v990, %v1038
          %1040 = vmatmul.bf16.gmra.mxu0 %v560
          %v1041 = vpop.f32.mrf.mxu0
          %v1042 = vadd.f32 %v993, %v1041
          %v1043 = vpop.f32.mrf.mxu0
          %v1044 = vadd.f32 %v995, %v1043
          %1045 = vmatmul.bf16.gmra.mxu0 %v562
          %v1046 = vpop.f32.mrf.mxu0
          %v1047 = vadd.f32 %v998, %v1046
          %v1048 = vpop.f32.mrf.mxu0
          %v1049 = vadd.f32 %v1000, %v1048
          %1050 = vdwg.mxu0
          %v1051 = vadd.f32 %v809, %v1012
          %v1052 = vadd.f32 %v810, %v1014
          %v1053 = vadd.f32 %v811, %v1017
          %v1054 = vadd.f32 %v812, %v1019
          %v1055 = vadd.f32 %v813, %v1022
          %v1056 = vadd.f32 %v814, %v1024
          %v1057 = vadd.f32 %v815, %v1027
          %v1058 = vadd.f32 %v816, %v1029
          %v1059 = vadd.f32 %v817, %v1032
          %v1060 = vadd.f32 %v818, %v1034
          %v1061 = vadd.f32 %v819, %v1037
          %v1062 = vadd.f32 %v820, %v1039
          %v1063 = vadd.f32 %v821, %v1042
          %v1064 = vadd.f32 %v822, %v1044
          %v1065 = vadd.f32 %v823, %v1047
          %v1066 = vadd.f32 %v824, %v1049
          %1067 = vst [vmem:[#allocation2] sm:$0xff] %v1051
          %1068 = vst [vmem:[#allocation2 + $0x10] sm:$0xff] %v1052
          %1069 = vst [vmem:[#allocation2 + $0x20] sm:$0xff] %v1053
          %1070 = vst [vmem:[#allocation2 + $0x30] sm:$0xff] %v1054
          %1071 = vst [vmem:[#allocation2 + $0x40] sm:$0xff] %v1055
          %1072 = vst [vmem:[#allocation2 + $0x50] sm:$0xff] %v1056
          %1073 = vst [vmem:[#allocation2 + $0x60] sm:$0xff] %v1057
          %1074 = vst [vmem:[#allocation2 + $0x70] sm:$0xff] %v1058
          %1075 = vst [vmem:[#allocation2 + $0x80] sm:$0xff] %v1059
          %1076 = vst [vmem:[#allocation2 + $0x90] sm:$0xff] %v1060
          %1077 = vst [vmem:[#allocation2 + $0xa0] sm:$0xff] %v1061
          %1078 = vst [vmem:[#allocation2 + $0xb0] sm:$0xff] %v1062
          %1079 = vst [vmem:[#allocation2 + $0xc0] sm:$0xff] %v1063
          %1080 = vst [vmem:[#allocation2 + $0xd0] sm:$0xff] %v1064
          %1081 = vst [vmem:[#allocation2 + $0xe0] sm:$0xff] %v1065
          %1082 = vst [vmem:[#allocation2 + $0xf0] sm:$0xff] %v1066
        $region86: #{multi_scale_conv.1} parent=73 // pred_fallthru
          _
        %p1083 = scmp.eq.s32.totalorder %s21, 3
        // Predicated region
        $region87: #{multi_scale_conv.1} parent=73 // pred_check
          %p1084 = pneg %p1083
        $region88: #{multi_scale_conv.1} parent=73 // pred_check_branch
          %1086 = sbr.rel (%p1084) target = $region90
        $region89: #{multi_scale_conv.1} parent=73 // pred_region
          %v1087 = vld [vmem:[#allocation2] sm:$0xff]
          %v1088 = vld [vmem:[#allocation2 + $0x8] sm:$0xff]
          %v1089 = vld [vmem:[#allocation2 + $0x10] sm:$0xff]
          %v1090 = vld [vmem:[#allocation2 + $0x18] sm:$0xff]
          %v1091 = vld [vmem:[#allocation2 + $0x20] sm:$0xff]
          %v1092 = vld [vmem:[#allocation2 + $0x28] sm:$0xff]
          %v1093 = vld [vmem:[#allocation2 + $0x30] sm:$0xff]
          %v1094 = vld [vmem:[#allocation2 + $0x38] sm:$0xff]
          %v1095 = vld [vmem:[#allocation2 + $0x40] sm:$0xff]
          %v1096 = vld [vmem:[#allocation2 + $0x48] sm:$0xff]
          %v1097 = vld [vmem:[#allocation2 + $0x50] sm:$0xff]
          %v1098 = vld [vmem:[#allocation2 + $0x58] sm:$0xff]
          %v1099 = vld [vmem:[#allocation2 + $0x60] sm:$0xff]
          %v1100 = vld [vmem:[#allocation2 + $0x68] sm:$0xff]
          %v1101 = vld [vmem:[#allocation2 + $0x70] sm:$0xff]
          %v1102 = vld [vmem:[#allocation2 + $0x78] sm:$0xff]
          %v1103 = vld [vmem:[#allocation2 + $0x80] sm:$0xff]
          %v1104 = vld [vmem:[#allocation2 + $0x88] sm:$0xff]
          %v1105 = vld [vmem:[#allocation2 + $0x90] sm:$0xff]
          %v1106 = vld [vmem:[#allocation2 + $0x98] sm:$0xff]
          %v1107 = vld [vmem:[#allocation2 + $0xa0] sm:$0xff]
          %v1108 = vld [vmem:[#allocation2 + $0xa8] sm:$0xff]
          %v1109 = vld [vmem:[#allocation2 + $0xb0] sm:$0xff]
          %v1110 = vld [vmem:[#allocation2 + $0xb8] sm:$0xff]
          %v1111 = vld [vmem:[#allocation2 + $0xc0] sm:$0xff]
          %v1112 = vld [vmem:[#allocation2 + $0xc8] sm:$0xff]
          %v1113 = vld [vmem:[#allocation2 + $0xd0] sm:$0xff]
          %v1114 = vld [vmem:[#allocation2 + $0xd8] sm:$0xff]
          %v1115 = vld [vmem:[#allocation2 + $0xe0] sm:$0xff]
          %v1116 = vld [vmem:[#allocation2 + $0xe8] sm:$0xff]
          %v1117 = vld [vmem:[#allocation2 + $0xf0] sm:$0xff]
          %v1118 = vld [vmem:[#allocation2 + $0xf8] sm:$0xff]
          %v1119 = vld [vmem:[%s3] sm:$0x3]
          %v1121 = vperm.slane %v1119, 0
          %v1122 = vperm.slane %v1119, 1
          %v1125 = vadd.f32 %v1087, %v1121
          %v1126 = vadd.f32 %v1088, %v1122
          %v1127 = vadd.f32 %v1089, %v1121
          %v1128 = vadd.f32 %v1090, %v1122
          %v1129 = vadd.f32 %v1091, %v1121
          %v1130 = vadd.f32 %v1092, %v1122
          %v1131 = vadd.f32 %v1093, %v1121
          %v1132 = vadd.f32 %v1094, %v1122
          %v1133 = vadd.f32 %v1095, %v1121
          %v1134 = vadd.f32 %v1096, %v1122
          %v1135 = vadd.f32 %v1097, %v1121
          %v1136 = vadd.f32 %v1098, %v1122
          %v1137 = vadd.f32 %v1099, %v1121
          %v1138 = vadd.f32 %v1100, %v1122
          %v1139 = vadd.f32 %v1101, %v1121
          %v1140 = vadd.f32 %v1102, %v1122
          %v1141 = vadd.f32 %v1103, %v1121
          %v1142 = vadd.f32 %v1104, %v1122
          %v1143 = vadd.f32 %v1105, %v1121
          %v1144 = vadd.f32 %v1106, %v1122
          %v1145 = vadd.f32 %v1107, %v1121
          %v1146 = vadd.f32 %v1108, %v1122
          %v1147 = vadd.f32 %v1109, %v1121
          %v1148 = vadd.f32 %v1110, %v1122
          %v1149 = vadd.f32 %v1111, %v1121
          %v1150 = vadd.f32 %v1112, %v1122
          %v1151 = vadd.f32 %v1113, %v1121
          %v1152 = vadd.f32 %v1114, %v1122
          %v1153 = vadd.f32 %v1115, %v1121
          %v1154 = vadd.f32 %v1116, %v1122
          %v1155 = vadd.f32 %v1117, %v1121
          %v1156 = vadd.f32 %v1118, %v1122
          %v1157 = vmax.f32 %v1125, 0.0
          %v1158 = vmax.f32 %v1126, 0.0
          %v1159 = vmax.f32 %v1127, 0.0
          %v1160 = vmax.f32 %v1128, 0.0
          %v1161 = vmax.f32 %v1129, 0.0
          %v1162 = vmax.f32 %v1130, 0.0
          %v1163 = vmax.f32 %v1131, 0.0
          %v1164 = vmax.f32 %v1132, 0.0
          %v1165 = vmax.f32 %v1133, 0.0
          %v1166 = vmax.f32 %v1134, 0.0
          %v1167 = vmax.f32 %v1135, 0.0
          %v1168 = vmax.f32 %v1136, 0.0
          %v1169 = vmax.f32 %v1137, 0.0
          %v1170 = vmax.f32 %v1138, 0.0
          %v1171 = vmax.f32 %v1139, 0.0
          %v1172 = vmax.f32 %v1140, 0.0
          %v1173 = vmax.f32 %v1141, 0.0
          %v1174 = vmax.f32 %v1142, 0.0
          %v1175 = vmax.f32 %v1143, 0.0
          %v1176 = vmax.f32 %v1144, 0.0
          %v1177 = vmax.f32 %v1145, 0.0
          %v1178 = vmax.f32 %v1146, 0.0
          %v1179 = vmax.f32 %v1147, 0.0
          %v1180 = vmax.f32 %v1148, 0.0
          %v1181 = vmax.f32 %v1149, 0.0
          %v1182 = vmax.f32 %v1150, 0.0
          %v1183 = vmax.f32 %v1151, 0.0
          %v1184 = vmax.f32 %v1152, 0.0
          %v1185 = vmax.f32 %v1153, 0.0
          %v1186 = vmax.f32 %v1154, 0.0
          %v1187 = vmax.f32 %v1155, 0.0
          %v1188 = vmax.f32 %v1156, 0.0
          %v1189 = vpack.c.bf16 %v1159, %v1157
          %v1190 = vpack.c.bf16 %v1160, %v1158
          %v1191 = vpack.c.bf16 %v1163, %v1161
          %v1192 = vpack.c.bf16 %v1164, %v1162
          %v1193 = vpack.c.bf16 %v1167, %v1165
          %v1194 = vpack.c.bf16 %v1168, %v1166
          %v1195 = vpack.c.bf16 %v1171, %v1169
          %v1196 = vpack.c.bf16 %v1172, %v1170
          %v1197 = vpack.c.bf16 %v1175, %v1173
          %v1198 = vpack.c.bf16 %v1176, %v1174
          %v1199 = vpack.c.bf16 %v1179, %v1177
          %v1200 = vpack.c.bf16 %v1180, %v1178
          %v1201 = vpack.c.bf16 %v1183, %v1181
          %v1202 = vpack.c.bf16 %v1184, %v1182
          %v1203 = vpack.c.bf16 %v1187, %v1185
          %v1204 = vpack.c.bf16 %v1188, %v1186
          %v1205 = vld [vmem:[%s4] sm:$0xf]
          %v1206 = vld [vmem:[%s4 + $0x4] sm:$0xf]
          %v1207 = vld [vmem:[%s4 + $0x8] sm:$0xf]
          %v1208 = vld [vmem:[%s4 + $0xc] sm:$0xf]
          %v1209 = vld [vmem:[%s4 + $0x10] sm:$0xf]
          %v1210 = vld [vmem:[%s4 + $0x14] sm:$0xf]
          %v1211 = vld [vmem:[%s4 + $0x18] sm:$0xf]
          %v1212 = vld [vmem:[%s4 + $0x1c] sm:$0xf]
          %v1213 = vld [vmem:[%s4 + $0x20] sm:$0xf]
          %v1214 = vld [vmem:[%s4 + $0x24] sm:$0xf]
          %v1215 = vld [vmem:[%s4 + $0x28] sm:$0xf]
          %v1216 = vld [vmem:[%s4 + $0x2c] sm:$0xf]
          %v1217 = vld [vmem:[%s4 + $0x30] sm:$0xf]
          %v1218 = vld [vmem:[%s4 + $0x34] sm:$0xf]
          %v1219 = vld [vmem:[%s4 + $0x38] sm:$0xf]
          %v1220 = vld [vmem:[%s4 + $0x3c] sm:$0xf]
          %v1221 = vld [vmem:[%s4 + $0x40] sm:$0xf]
          %v1222 = vld [vmem:[%s4 + $0x44] sm:$0xf]
          %v1223 = vld [vmem:[%s4 + $0x48] sm:$0xf]
          %v1224 = vld [vmem:[%s4 + $0x4c] sm:$0xf]
          %v1225 = vld [vmem:[%s4 + $0x50] sm:$0xf]
          %v1226 = vld [vmem:[%s4 + $0x54] sm:$0xf]
          %v1227 = vld [vmem:[%s4 + $0x58] sm:$0xf]
          %v1228 = vld [vmem:[%s4 + $0x5c] sm:$0xf]
          %v1229 = vld [vmem:[%s4 + $0x60] sm:$0xf]
          %v1230 = vld [vmem:[%s4 + $0x64] sm:$0xf]
          %v1231 = vld [vmem:[%s4 + $0x68] sm:$0xf]
          %v1232 = vld [vmem:[%s4 + $0x6c] sm:$0xf]
          %v1233 = vld [vmem:[%s4 + $0x70] sm:$0xf]
          %v1234 = vld [vmem:[%s4 + $0x74] sm:$0xf]
          %v1235 = vld [vmem:[%s4 + $0x78] sm:$0xf]
          %v1236 = vld [vmem:[%s4 + $0x7c] sm:$0xf]
          %v1269 = vunpack.c.l.b16 %v1205
          %v1270 = vunpack.c.l.b16 %v1206
          %v1271 = vunpack.c.l.b16 %v1207
          %v1272 = vunpack.c.l.b16 %v1208
          %v1273 = vunpack.c.l.b16 %v1209
          %v1274 = vunpack.c.l.b16 %v1210
          %v1275 = vunpack.c.l.b16 %v1211
          %v1276 = vunpack.c.l.b16 %v1212
          %v1277 = vunpack.c.l.b16 %v1213
          %v1278 = vunpack.c.l.b16 %v1214
          %v1279 = vunpack.c.l.b16 %v1215
          %v1280 = vunpack.c.l.b16 %v1216
          %v1281 = vunpack.c.l.b16 %v1217
          %v1282 = vunpack.c.l.b16 %v1218
          %v1283 = vunpack.c.l.b16 %v1219
          %v1284 = vunpack.c.l.b16 %v1220
          %v1285 = vunpack.c.l.b16 %v1221
          %v1286 = vunpack.c.l.b16 %v1222
          %v1287 = vunpack.c.l.b16 %v1223
          %v1288 = vunpack.c.l.b16 %v1224
          %v1289 = vunpack.c.l.b16 %v1225
          %v1290 = vunpack.c.l.b16 %v1226
          %v1291 = vunpack.c.l.b16 %v1227
          %v1292 = vunpack.c.l.b16 %v1228
          %v1293 = vunpack.c.l.b16 %v1229
          %v1294 = vunpack.c.l.b16 %v1230
          %v1295 = vunpack.c.l.b16 %v1231
          %v1296 = vunpack.c.l.b16 %v1232
          %v1297 = vunpack.c.l.b16 %v1233
          %v1298 = vunpack.c.l.b16 %v1234
          %v1299 = vunpack.c.l.b16 %v1235
          %v1300 = vunpack.c.l.b16 %v1236
          %v1301 = vpack.c.b16 %v1270, %v1269
          %v1302 = vpack.c.b16 %v1272, %v1271
          %v1303 = vpack.c.b16 %v1274, %v1273
          %v1304 = vpack.c.b16 %v1276, %v1275
          %v1305 = vpack.c.b16 %v1278, %v1277
          %v1306 = vpack.c.b16 %v1280, %v1279
          %v1307 = vpack.c.b16 %v1282, %v1281
          %v1308 = vpack.c.b16 %v1284, %v1283
          %v1309 = vpack.c.b16 %v1286, %v1285
          %v1310 = vpack.c.b16 %v1288, %v1287
          %v1311 = vpack.c.b16 %v1290, %v1289
          %v1312 = vpack.c.b16 %v1292, %v1291
          %v1313 = vpack.c.b16 %v1294, %v1293
          %v1314 = vpack.c.b16 %v1296, %v1295
          %v1315 = vpack.c.b16 %v1298, %v1297
          %v1316 = vpack.c.b16 %v1300, %v1299
          %1333 = vmatpush.bf16.msra.mxu0 %v1308
          %1334 = vmatpush.bf16.msra.mxu0 %v1307
          %1335 = vmatpush.bf16.msra.mxu0 %v1306
          %1336 = vmatpush.bf16.msra.mxu0 %v1305
          %1337 = vmatpush.bf16.msra.mxu0 %v1304
          %1338 = vmatpush.bf16.msra.mxu0 %v1303
          %1339 = vmatpush.bf16.msra.mxu0 %v1302
          %1340 = vmatpush.bf16.msra.mxu0 %v1301
          %1341 = vmatmul.bf16.gmra.mxu0 %v1189
          %v1342 = vpop.f32.mrf.mxu0
          %v1343 = vadd.f32 0.0, %v1342
          %v1344 = vpop.f32.mrf.mxu0
          %v1345 = vadd.f32 0.0, %v1344
          %1346 = vmatmul.bf16.gmra.mxu0 %v1191
          %v1347 = vpop.f32.mrf.mxu0
          %v1348 = vadd.f32 0.0, %v1347
          %v1349 = vpop.f32.mrf.mxu0
          %v1350 = vadd.f32 0.0, %v1349
          %1351 = vmatmul.bf16.gmra.mxu0 %v1193
          %v1352 = vpop.f32.mrf.mxu0
          %v1353 = vadd.f32 0.0, %v1352
          %v1354 = vpop.f32.mrf.mxu0
          %v1355 = vadd.f32 0.0, %v1354
          %1356 = vmatmul.bf16.gmra.mxu0 %v1195
          %v1357 = vpop.f32.mrf.mxu0
          %v1358 = vadd.f32 0.0, %v1357
          %v1359 = vpop.f32.mrf.mxu0
          %v1360 = vadd.f32 0.0, %v1359
          %1361 = vmatmul.bf16.gmra.mxu0 %v1197
          %v1362 = vpop.f32.mrf.mxu0
          %v1363 = vadd.f32 0.0, %v1362
          %v1364 = vpop.f32.mrf.mxu0
          %v1365 = vadd.f32 0.0, %v1364
          %1366 = vmatmul.bf16.gmra.mxu0 %v1199
          %v1367 = vpop.f32.mrf.mxu0
          %v1368 = vadd.f32 0.0, %v1367
          %v1369 = vpop.f32.mrf.mxu0
          %v1370 = vadd.f32 0.0, %v1369
          %1371 = vmatmul.bf16.gmra.mxu0 %v1201
          %v1372 = vpop.f32.mrf.mxu0
          %v1373 = vadd.f32 0.0, %v1372
          %v1374 = vpop.f32.mrf.mxu0
          %v1375 = vadd.f32 0.0, %v1374
          %1376 = vmatmul.bf16.gmra.mxu0 %v1203
          %v1377 = vpop.f32.mrf.mxu0
          %v1378 = vadd.f32 0.0, %v1377
          %v1379 = vpop.f32.mrf.mxu0
          %v1380 = vadd.f32 0.0, %v1379
          %1381 = vdwg.mxu0
          %1382 = vmatpush.bf16.msra.mxu0 %v1316
          %1383 = vmatpush.bf16.msra.mxu0 %v1315
          %1384 = vmatpush.bf16.msra.mxu0 %v1314
          %1385 = vmatpush.bf16.msra.mxu0 %v1313
          %1386 = vmatpush.bf16.msra.mxu0 %v1312
          %1387 = vmatpush.bf16.msra.mxu0 %v1311
          %1388 = vmatpush.bf16.msra.mxu0 %v1310
          %1389 = vmatpush.bf16.msra.mxu0 %v1309
          %1390 = vmatmul.bf16.gmra.mxu0 %v1190
          %v1391 = vpop.f32.mrf.mxu0
          %v1392 = vadd.f32 %v1343, %v1391
          %v1393 = vpop.f32.mrf.mxu0
          %v1394 = vadd.f32 %v1345, %v1393
          %1395 = vmatmul.bf16.gmra.mxu0 %v1192
          %v1396 = vpop.f32.mrf.mxu0
          %v1397 = vadd.f32 %v1348, %v1396
          %v1398 = vpop.f32.mrf.mxu0
          %v1399 = vadd.f32 %v1350, %v1398
          %1400 = vmatmul.bf16.gmra.mxu0 %v1194
          %v1401 = vpop.f32.mrf.mxu0
          %v1402 = vadd.f32 %v1353, %v1401
          %v1403 = vpop.f32.mrf.mxu0
          %v1404 = vadd.f32 %v1355, %v1403
          %1405 = vmatmul.bf16.gmra.mxu0 %v1196
          %v1406 = vpop.f32.mrf.mxu0
          %v1407 = vadd.f32 %v1358, %v1406
          %v1408 = vpop.f32.mrf.mxu0
          %v1409 = vadd.f32 %v1360, %v1408
          %1410 = vmatmul.bf16.gmra.mxu0 %v1198
          %v1411 = vpop.f32.mrf.mxu0
          %v1412 = vadd.f32 %v1363, %v1411
          %v1413 = vpop.f32.mrf.mxu0
          %v1414 = vadd.f32 %v1365, %v1413
          %1415 = vmatmul.bf16.gmra.mxu0 %v1200
          %v1416 = vpop.f32.mrf.mxu0
          %v1417 = vadd.f32 %v1368, %v1416
          %v1418 = vpop.f32.mrf.mxu0
          %v1419 = vadd.f32 %v1370, %v1418
          %1420 = vmatmul.bf16.gmra.mxu0 %v1202
          %v1421 = vpop.f32.mrf.mxu0
          %v1422 = vadd.f32 %v1373, %v1421
          %v1423 = vpop.f32.mrf.mxu0
          %v1424 = vadd.f32 %v1375, %v1423
          %1425 = vmatmul.bf16.gmra.mxu0 %v1204
          %v1426 = vpop.f32.mrf.mxu0
          %v1427 = vadd.f32 %v1378, %v1426
          %v1428 = vpop.f32.mrf.mxu0
          %v1429 = vadd.f32 %v1380, %v1428
          %1430 = vdwg.mxu0
          %v1431 = vpack.c.bf16 %v1392, %v1392
          %v1432 = vpack.c.bf16 %v1394, %v1394
          %v1433 = vpack.c.bf16 %v1397, %v1397
          %v1434 = vpack.c.bf16 %v1399, %v1399
          %v1435 = vpack.c.bf16 %v1402, %v1402
          %v1436 = vpack.c.bf16 %v1404, %v1404
          %v1437 = vpack.c.bf16 %v1407, %v1407
          %v1438 = vpack.c.bf16 %v1409, %v1409
          %v1439 = vpack.c.bf16 %v1412, %v1412
          %v1440 = vpack.c.bf16 %v1414, %v1414
          %v1441 = vpack.c.bf16 %v1417, %v1417
          %v1442 = vpack.c.bf16 %v1419, %v1419
          %v1443 = vpack.c.bf16 %v1422, %v1422
          %v1444 = vpack.c.bf16 %v1424, %v1424
          %v1445 = vpack.c.bf16 %v1427, %v1427
          %v1446 = vpack.c.bf16 %v1429, %v1429
          %1447 = vst [vmem:[%s397] sm:$0xf] %v1431
          %1448 = vst [vmem:[%s397 + $0x4] sm:$0xf] %v1432
          %1449 = vst [vmem:[%s397 + $0x8] sm:$0xf] %v1433
          %1450 = vst [vmem:[%s397 + $0xc] sm:$0xf] %v1434
          %1451 = vst [vmem:[%s397 + $0x10] sm:$0xf] %v1435
          %1452 = vst [vmem:[%s397 + $0x14] sm:$0xf] %v1436
          %1453 = vst [vmem:[%s397 + $0x18] sm:$0xf] %v1437
          %1454 = vst [vmem:[%s397 + $0x1c] sm:$0xf] %v1438
          %1455 = vst [vmem:[%s397 + $0x20] sm:$0xf] %v1439
          %1456 = vst [vmem:[%s397 + $0x24] sm:$0xf] %v1440
          %1457 = vst [vmem:[%s397 + $0x28] sm:$0xf] %v1441
          %1458 = vst [vmem:[%s397 + $0x2c] sm:$0xf] %v1442
          %1459 = vst [vmem:[%s397 + $0x30] sm:$0xf] %v1443
          %1460 = vst [vmem:[%s397 + $0x34] sm:$0xf] %v1444
          %1461 = vst [vmem:[%s397 + $0x38] sm:$0xf] %v1445
          %1462 = vst [vmem:[%s397 + $0x3c] sm:$0xf] %v1446
        $region90: #{multi_scale_conv.1} parent=73 // pred_fallthru
          _
        %s1463 = smul.u32 16, %s20
        %p1464 = scmp.lt.s32.totalorder %s1463, 15
        %s1465 = scalar_select %p1464, %s1463, 15
        %s1466 = smul.addr %s1465, 4
        %s1467 = scalar_lea.vmem %s5, %s1466
        // Predicated region
        $region91: #{multi_scale_conv.1} parent=73 // pred_check
          %p1468 = pneg %p172
        $region92: #{multi_scale_conv.1} parent=73 // pred_check_branch
          %1470 = sbr.rel (%p1468) target = $region94
        $region93: #{multi_scale_conv.1} parent=73 // pred_region
          %s1471 = smul.u32 16, %s20
        $region94: #{multi_scale_conv.1} parent=73 // pred_fallthru
          _
        // Predicated region
        $region95: #{multi_scale_conv.1} parent=73 // pred_check
          %p1472 = pneg %p172
        $region96: #{multi_scale_conv.1} parent=73 // pred_check_branch
          %1474 = sbr.rel (%p1472) target = $region98
        $region97: #{multi_scale_conv.1} parent=73 // pred_region
          %s1475 = smul.u32 16, %s20
          %p1476 = scmp.lt.s32.totalorder %s1475, 15
          %s1477 = scalar_select %p1476, %s1475, 15
          %s1478 = smul.addr %s1477, 4
          %s1479 = scalar_lea.vmem %s5, %s1478
        $region98: #{multi_scale_conv.1} parent=73 // pred_fallthru
          _
      $region74: #{multi_scale_conv.1} parent=5 // pred_fallthru
        _
      %p1480 = scmp.le.s32.totalorder 2, %s11
      // Predicated region
      $region99: #{multi_scale_conv.1} parent=5 // pred_check
        %p1481 = pneg %p1480
      $region100: #{multi_scale_conv.1} parent=5 // pred_check_branch
        %1483 = sbr.rel (%p1481) target = $region102
      $region101: #{multi_scale_conv.1} parent=5 // pred_region
        %s1484 = ssub.s32 %s11, 2
      $region102: #{multi_scale_conv.1} parent=5 // pred_fallthru
        _
    $region6: #{multi_scale_conv.1} parent=1 // loop_footer
      %s15 = sadd.s32 1, %s11
    $region7: #{multi_scale_conv.1} parent=1 // loop_footer_branch
      %10 = sbr.rel target = $region3
    $region8: #{multi_scale_conv.1} parent=1 // loop_exit
      _

</llo_original>
